<compile_context>
chip_gen: v6e
topology: v6e:2x2x1
jax: 0.10.0
libtpu: 0.0.40
codegen_flags: <defaults>
</compile_context>

<pallas_src>
import functools

import jax
import jax.numpy as jnp
import numpy as np
from jax import lax
from jax.experimental import pallas as pl
from jax.experimental.pallas import tpu as pltpu

_BN_EPS = 1e-5


# ----------------------------------------------------------------------------
# Fused kernel: B batch samples per grid step, everything lane-dense.
# ----------------------------------------------------------------------------
def _fused_block_kernel(*args, B, H, stride, lane_fold, has_shortcut_conv,
                        mm_dtype):
    (x_ref, s1_ref, b1_ref, bw1_ref, ms2_ref, mb2_ref, bw2_ref,
     cbo_ref) = args[:8]
    pos = 8
    wsc_ref = rowsel_ref = xsel_ref = None
    if has_shortcut_conv:
        wsc_ref = args[pos]
        pos += 1
    if stride > 1:
        rowsel_ref = args[pos]
        xsel_ref = args[pos + 1]
        pos += 2
    out_ref, pad1_ref, pad2_ref = args[pos:pos + 3]

    Kin = x_ref.shape[2]          # W * Cin   (lane-dense)
    Kmid = bw1_ref.shape[2]       # W * Cmid
    Hp = H + 2                    # padded rows per sample
    M2 = B * Hp - 2               # band-matmul M dimension

    x2 = x_ref[0]                 # (B*H, Kin) f32 stacked samples

    # ---- stage 1: BN1 (folded) + ReLU, row-zero-padded per sample ------------
    a1 = jnp.maximum(x2 * s1_ref[...] + b1_ref[...], 0.0)            # (B*H, Kin)
    zin = jnp.zeros((1, Kin), jnp.float32)
    for b in range(B):
        base = b * Hp
        # NOTE: zeroing separator rows "once at program_id()==0" is NOT
        # megacore-safe (each TC has its own scratch), so they are rewritten
        # every step (cheap single-row stores).
        pad1_ref[base:base + 1, :] = zin
        pad1_ref[base + 1:base + 1 + H, :] = a1[b * H:(b + 1) * H, :]
        pad1_ref[base + H + 1:base + H + 2, :] = zin

    # ---- conv1: 3 row-band matmuls over the whole B-sample stack -------------
    out1 = jnp.dot(pad1_ref[0:M2, :].astype(mm_dtype), bw1_ref[0],
                   preferred_element_type=jnp.float32)
    for dy in (1, 2):
        out1 = out1 + jnp.dot(pad1_ref[dy:dy + M2, :].astype(mm_dtype),
                              bw1_ref[dy], preferred_element_type=jnp.float32)
    # out1 row (b*Hp + h) is conv1 output row h of sample b (cb1 folded below).

    # ---- stage 2: dropout*BN2 folded affine + ReLU, re-padded -----------------
    zmid = jnp.zeros((1, Kmid), jnp.float32)
    for b in range(B):
        base = b * Hp
        a2b = jnp.maximum(out1[base:base + H, :] * ms2_ref[b] + mb2_ref[b], 0.0)
        pad2_ref[base:base + 1, :] = zmid
        pad2_ref[base + 1:base + 1 + H, :] = a2b
        pad2_ref[base + H + 1:base + H + 2, :] = zmid

    # ---- conv2: 3 row-band matmuls (column stride & padding folded into bw2) --
    acc = jnp.dot(pad2_ref[0:M2, :].astype(mm_dtype), bw2_ref[0],
                  preferred_element_type=jnp.float32)
    for dy in (1, 2):
        acc = acc + jnp.dot(pad2_ref[dy:dy + M2, :].astype(mm_dtype),
                            bw2_ref[dy], preferred_element_type=jnp.float32)
    # acc row (b*Hp + ho*stride) is conv2 output row ho of sample b.

    # ---- shortcut + final row selection + store -------------------------------
    if stride == 1:
        if has_shortcut_conv:
            sc_all = jnp.dot(x2.astype(mm_dtype), wsc_ref[...],
                             preferred_element_type=jnp.float32)   # (B*H, Kout)
        for b in range(B):
            res_b = acc[b * Hp:b * Hp + H, :] + cbo_ref[...]
            if has_shortcut_conv:
                res_b = res_b + sc_all[b * H:(b + 1) * H, :]
            else:
                res_b = res_b + x2[b * H:(b + 1) * H, :]           # identity
            out_ref[0, b * H:(b + 1) * H, :] = res_b
    else:
        # Per fold-phase 0/1 selection matmuls; phases are concatenated on the
        # lane axis so the output store is >=128 lanes (unmasked).
        pieces = []
        for f in range(lane_fold):
            piece = jnp.dot(rowsel_ref[f], acc,
                            preferred_element_type=jnp.float32) + cbo_ref[...]
            if has_shortcut_conv:
                x_sel = jnp.dot(xsel_ref[f], x2,
                                preferred_element_type=jnp.float32)
                piece = piece + jnp.dot(x_sel.astype(mm_dtype), wsc_ref[...],
                                        preferred_element_type=jnp.float32)
            pieces.append(piece)
        out_full = pieces[0] if lane_fold == 1 else jnp.concatenate(pieces,
                                                                    axis=-1)
        out_ref[0] = out_full


# ----------------------------------------------------------------------------
# Banded-weight construction (wrapper side, plain XLA)
# ----------------------------------------------------------------------------
def _tap_selector(kw, wi, wo, stride, pad):
    sel = np.zeros((kw, wi, wo), np.float32)
    for dx in range(kw):
        for o in range(wo):
            i = o * stride - pad + dx
            if 0 <= i < wi:
                sel[dx, i, o] = 1.0
    return jnp.asarray(sel)


def _banded_conv_weight(w_oihw, wi, wo, stride, pad):
    """Fold the W-axis taps / stride / zero-padding of a conv into a banded
    weight: (Co, Ci, KH, KW) -> (KH, wi*Ci, wo*Co)."""
    co, ci, khh, kw = w_oihw.shape
    w_t = jnp.transpose(w_oihw, (2, 3, 1, 0)).astype(jnp.float32)   # (KH,KW,Ci,Co)
    sel = _tap_selector(kw, wi, wo, stride, pad)                    # (KW,wi,wo)
    big = jnp.einsum("xiw,kxcd->kicwd", sel, w_t)
    return big.reshape(khh, wi * ci, wo * co)


# ----------------------------------------------------------------------------
# Public wrapper
# ----------------------------------------------------------------------------
def dropout_wide_basic_forward(x_nchw, params, dropout_mask_nc, *, stride,
                               block_batch=None, matmul_dtype=jnp.bfloat16):
    """Forward of DropoutWideBasic. x_nchw: (N, Cin, H, W) f32 -> NCHW out."""
    N, Cin, H, W = x_nchw.shape
    Cmid = params["conv1_w"].shape[0]
    Cout = params["conv2_w"].shape[0]
    Ho = (H + 2 - 3) // stride + 1
    Wo = (W + 2 - 3) // stride + 1
    Kin, Kmid, Kout = W * Cin, W * Cmid, Wo * Cout

    if block_batch is None:
        block_batch = next(b for b in (8, 4, 2, 1) if N % b == 0)
    B = block_batch
    assert N % B == 0, "batch must be divisible by block_batch"
    Hp = H + 2
    M2 = B * Hp - 2

    has_sc = params["shortcut_w"] is not None
    if not has_sc:
        assert stride == 1 and Cin == Cout, \
            "identity shortcut needs stride=1, Cin==Cout"
    if stride > 1:
        assert has_sc

    # Lane-fold factor for the output so the last dim is a multiple of 128.
    if stride == 1 or Kout % 128 == 0:
        F = 1
    elif 128 % Kout == 0 and Ho % (128 // Kout) == 0:
        F = 128 // Kout
    else:
        F = 1
    R_out = Ho // F
    L_out = F * Kout

    # NCHW -> lane-dense stacked (N/B, B*H, W*Cin): [.., b*H + h, w*Cin + c]
    x = jnp.transpose(x_nchw, (0, 2, 3, 1)).astype(jnp.float32)
    x = x.reshape(N // B, B * H, Kin)

    def fold_bn(gamma, beta, mean, var):
        scale = gamma / jnp.sqrt(var + _BN_EPS)
        return scale, beta - mean * scale

    scale1, bias1 = fold_bn(params["bn1_gamma"], params["bn1_beta"],
                            params["bn1_mean"], params["bn1_var"])
    scale2, bias2 = fold_bn(params["bn2_gamma"], params["bn2_beta"],
                            params["bn2_mean"], params["bn2_var"])

    s1_row = jnp.tile(scale1, W).reshape(1, Kin).astype(jnp.float32)
    b1_row = jnp.tile(bias1, W).reshape(1, Kin).astype(jnp.float32)

    # Fold dropout mask + conv1 bias into the BN2 affine (per sample).
    ms2_nc = dropout_mask_nc.astype(jnp.float32) * scale2[None, :]
    mb2_nc = params["conv1_b"].astype(jnp.float32)[None, :] * ms2_nc \
        + bias2[None, :]
    ms2 = jnp.tile(ms2_nc, (1, W)).reshape(N, 1, Kmid)
    mb2 = jnp.tile(mb2_nc, (1, W)).reshape(N, 1, Kmid)

    # conv2 bias (+ shortcut bias) pre-summed into one row vector.
    cbo = jnp.tile(params["conv2_b"].astype(jnp.float32), Wo)
    if has_sc:
        cbo = cbo + jnp.tile(params["shortcut_b"].astype(jnp.float32), Wo)
    cbo_row = cbo.reshape(1, Kout)

    bw1 = _banded_conv_weight(params["conv1_w"], W, W, 1, 1).astype(matmul_dtype)
    bw2 = _banded_conv_weight(params["conv2_w"], W, Wo, stride, 1).astype(matmul_dtype)

    inputs = [x, s1_row, b1_row, bw1, ms2, mb2, bw2, cbo_row]
    in_specs = [
        pl.BlockSpec((1, B * H, Kin), lambda n: (n, 0, 0)),
        pl.BlockSpec((1, Kin), lambda n: (0, 0)),
        pl.BlockSpec((1, Kin), lambda n: (0, 0)),
        pl.BlockSpec((3, Kin, Kmid), lambda n: (0, 0, 0)),
        pl.BlockSpec((B, 1, Kmid), lambda n: (n, 0, 0)),
        pl.BlockSpec((B, 1, Kmid), lambda n: (n, 0, 0)),
        pl.BlockSpec((3, Kmid, Kout), lambda n: (0, 0, 0)),
        pl.BlockSpec((1, Kout), lambda n: (0, 0)),
    ]
    if has_sc:
        wsc = _banded_conv_weight(params["shortcut_w"], W, Wo, stride,
                                  0)[0].astype(matmul_dtype)
        inputs.append(wsc)
        in_specs.append(pl.BlockSpec((Kin, Kout), lambda n: (0, 0)))
    if stride > 1:
        # 0/1 selection matrices: rowsel picks conv2 output rows (strided, per
        # fold phase) from the stacked accumulator; xsel picks the matching
        # strided x rows for the 1x1 shortcut conv.
        rowsel = np.zeros((F, B * R_out, M2), np.float32)
        xsel = np.zeros((F, B * R_out, B * H), np.float32)
        for f in range(F):
            for b in range(B):
                for q in range(R_out):
                    ho = q * F + f
                    rowsel[f, b * R_out + q, b * Hp + ho * stride] = 1.0
                    xsel[f, b * R_out + q, b * H + ho * stride] = 1.0
        inputs += [jnp.asarray(rowsel), jnp.asarray(xsel)]
        in_specs += [pl.BlockSpec((F, B * R_out, M2), lambda n: (0, 0, 0)),
                     pl.BlockSpec((F, B * R_out, B * H), lambda n: (0, 0, 0))]

    kernel = functools.partial(
        _fused_block_kernel, B=B, H=H, stride=stride, lane_fold=F,
        has_shortcut_conv=has_sc, mm_dtype=matmul_dtype)

    out = pl.pallas_call(
        kernel,
        out_shape=jax.ShapeDtypeStruct((N // B, B * R_out, L_out), jnp.float32),
        grid=(N // B,),
        in_specs=in_specs,
        out_specs=pl.BlockSpec((1, B * R_out, L_out), lambda n: (n, 0, 0)),
        scratch_shapes=[pltpu.VMEM((B * Hp, Kin), jnp.float32),
                        pltpu.VMEM((B * Hp, Kmid), jnp.float32)],
        compiler_params=pltpu.CompilerParams(
            dimension_semantics=("parallel",),
            vmem_limit_bytes=64 * 1024 * 1024),
    )(*inputs)

    # lane-dense stacked output -> NCHW (the fold phases flatten back into Ho).
    out = out.reshape(N, Ho, Wo, Cout)
    return jnp.transpose(out, (0, 3, 1, 2))


# ----------------------------------------------------------------------------
# Plain-JAX (XLA) reference, mirroring the PyTorch forward in NCHW
# ----------------------------------------------------------------------------
def reference_forward(x, params, mask_nc, stride):
    def bn(y, g, b, m, v):
        sc = (g / jnp.sqrt(v + _BN_EPS))[None, :, None, None]
        return (y - m[None, :, None, None]) * sc + b[None, :, None, None]

    def conv(y, w, b, s, pad):
        o = lax.conv_general_dilated(
            y, w, (s, s), ((pad, pad), (pad, pad)),
            dimension_numbers=("NCHW", "OIHW", "NCHW"))
        return o + b[None, :, None, None]

    a = jax.nn.relu(bn(x, params["bn1_gamma"], params["bn1_beta"],
                       params["bn1_mean"], params["bn1_var"]))
    out = conv(a, params["conv1_w"], params["conv1_b"], 1, 1)
    out = out * mask_nc[:, :, None, None]
    a2 = jax.nn.relu(bn(out, params["bn2_gamma"], params["bn2_beta"],
                        params["bn2_mean"], params["bn2_var"]))
    out = conv(a2, params["conv2_w"], params["conv2_b"], stride, 1)
    if params["shortcut_w"] is None:
        sc = x
    else:
        sc = conv(x, params["shortcut_w"], params["shortcut_b"], stride, 0)
    return out + sc


# ----------------------------------------------------------------------------
# Test harness
# ----------------------------------------------------------------------------
def _make_case(key, *, N, in_planes, planes, H, W, stride, dropout_rate):
    ks = jax.random.split(key, 16)
    x = jax.random.normal(ks[0], (N, in_planes, H, W), jnp.float32)
    params = dict(
        bn1_gamma=1.0 + 0.1 * jax.random.normal(ks[1], (in_planes,), jnp.float32),
        bn1_beta=0.1 * jax.random.normal(ks[2], (in_planes,), jnp.float32),
        bn1_mean=0.1 * jax.random.normal(ks[3], (in_planes,), jnp.float32),
        bn1_var=1.0 + 0.1 * jnp.abs(jax.random.normal(ks[4], (in_planes,), jnp.float32)),
        conv1_w=0.2 * jax.random.normal(ks[5], (planes, in_planes, 3, 3), jnp.float32),
        conv1_b=0.1 * jax.random.normal(ks[6], (planes,), jnp.float32),
        bn2_gamma=1.0 + 0.1 * jax.random.normal(ks[7], (planes,), jnp.float32),
        bn2_beta=0.1 * jax.random.normal(ks[8], (planes,), jnp.float32),
        bn2_mean=0.1 * jax.random.normal(ks[9], (planes,), jnp.float32),
        bn2_var=1.0 + 0.1 * jnp.abs(jax.random.normal(ks[10], (planes,), jnp.float32)),
        conv2_w=0.2 * jax.random.normal(ks[11], (planes, planes, 3, 3), jnp.float32),
        conv2_b=0.1 * jax.random.normal(ks[12], (planes,), jnp.float32),
    )
    if stride != 1 or in_planes != planes:
        params["shortcut_w"] = 0.2 * jax.random.normal(
            ks[13], (planes, in_planes, 1, 1), jnp.float32)
        params["shortcut_b"] = 0.1 * jax.random.normal(ks[14], (planes,), jnp.float32)
    else:
        params["shortcut_w"] = None
        params["shortcut_b"] = None
    # ConsistentMCDropout2d: one Bernoulli mask per (sample, channel), scaled
    # by 1/(1-p); fixed key = "consistent" across repeated forwards.
    if dropout_rate > 0.0:
        keep = jax.random.bernoulli(ks[15], 1.0 - dropout_rate, (N, planes))
        mask_nc = keep.astype(jnp.float32) / (1.0 - dropout_rate)
    else:
        mask_nc = jnp.ones((N, planes), jnp.float32)
    return x, params, mask_nc


if __name__ == "__main__":
    key = jax.random.PRNGKey(0)
    # N=16 with block_batch=4 -> grid=(4,): both v7x TensorCores get 2 steps
    # each and every band matmul runs with M = 4*18-2 = 70 stacked rows.
    N, H, W, dropout_rate, block_batch = 16, 16, 16, 0.25, 4

    # (name, in_planes, planes, stride)
    cases = [
        ("expand Cin=4->8, stride=1 (1x1-conv shortcut)", 4, 8, 1),
        ("Cin=Cout=8, stride=1 (identity shortcut)", 8, 8, 1),
        ("downsample Cin=4->8, stride=2 (strided shortcut)", 4, 8, 2),
    ]

    for name, in_planes, planes, stride in cases:
        key, sub = jax.random.split(key)
        x, params, mask_nc = _make_case(
            sub, N=N, in_planes=in_planes, planes=planes,
            H=H, W=W, stride=stride, dropout_rate=dropout_rate)

        ref = reference_forward(x, params, mask_nc, stride)

        # f32 matmul path: tight tolerance.
        out_f32 = dropout_wide_basic_forward(
            x, params, mask_nc, stride=stride, block_batch=block_batch,
            matmul_dtype=jnp.float32)
        out_f32 = jax.block_until_ready(out_f32)
        assert out_f32.shape == ref.shape, (name, out_f32.shape, ref.shape)
        assert jnp.allclose(out_f32, ref, atol=2e-3, rtol=2e-3), \
            (name, "f32", float(jnp.max(jnp.abs(out_f32 - ref))))

        # bf16 matmul path (v6e/v7x MXU-native): looser tolerance.
        out_bf16 = dropout_wide_basic_forward(
            x, params, mask_nc, stride=stride, block_batch=block_batch,
            matmul_dtype=jnp.bfloat16)
        out_bf16 = jax.block_until_ready(out_bf16)
        rel = float(jnp.linalg.norm(out_bf16 - ref) / jnp.linalg.norm(ref))
        max_err = float(jnp.max(jnp.abs(out_bf16 - ref)))
        assert rel < 2e-2 and max_err < 0.3, (name, "bf16", rel, max_err)

    print("KERNEL_OK")
</pallas_src>

<mosaic_0001>
module attributes {stable_mosaic.version = 11 : i64} {
  func.func @_fused_block_kernel(%arg0: i32, %arg1: memref<1x64x64xf32, #tpu.memory_space<vmem>>, %arg2: memref<1x64xf32, #tpu.memory_space<vmem>>, %arg3: memref<1x64xf32, #tpu.memory_space<vmem>>, %arg4: memref<3x64x128xf32, #tpu.memory_space<vmem>>, %arg5: memref<4x1x128xf32, #tpu.memory_space<vmem>>, %arg6: memref<4x1x128xf32, #tpu.memory_space<vmem>>, %arg7: memref<3x128x128xf32, #tpu.memory_space<vmem>>, %arg8: memref<1x128xf32, #tpu.memory_space<vmem>>, %arg9: memref<64x128xf32, #tpu.memory_space<vmem>>, %arg10: memref<1x64x128xf32, #tpu.memory_space<vmem>>, %arg11: memref<72x64xf32, #tpu.memory_space<vmem>>, %arg12: memref<72x128xf32, #tpu.memory_space<vmem>>) attributes {dimension_semantics = [#tpu.dimension_semantics<parallel>], iteration_bounds = array<i64: 4>, scalar_prefetch = 0 : i64, scratch_operands = 2 : i64, tpu.core_type = #tpu.core_type<tc>, window_params = [{transform_indices = @transform_0, window_bounds = array<i64: 1, 64, 64>}, {pipeline_mode = #tpu.pipeline_mode<synchronous>, transform_indices = @transform_1, window_bounds = array<i64: 1, 64>}, {pipeline_mode = #tpu.pipeline_mode<synchronous>, transform_indices = @transform_2, window_bounds = array<i64: 1, 64>}, {pipeline_mode = #tpu.pipeline_mode<synchronous>, transform_indices = @transform_3, window_bounds = array<i64: 3, 64, 128>}, {transform_indices = @transform_4, window_bounds = array<i64: 4, 1, 128>}, {transform_indices = @transform_5, window_bounds = array<i64: 4, 1, 128>}, {pipeline_mode = #tpu.pipeline_mode<synchronous>, transform_indices = @transform_6, window_bounds = array<i64: 3, 128, 128>}, {pipeline_mode = #tpu.pipeline_mode<synchronous>, transform_indices = @transform_7, window_bounds = array<i64: 1, 128>}, {pipeline_mode = #tpu.pipeline_mode<synchronous>, transform_indices = @transform_8, window_bounds = array<i64: 64, 128>}, {transform_indices = @transform_9, window_bounds = array<i64: 1, 64, 128>}]} {
    %c0 = arith.constant 0 : index
    %c0_0 = arith.constant 0 : index
    %c0_1 = arith.constant 0 : index
    %0 = vector.load %arg1[%c0, %c0_0, %c0_1] : memref<1x64x64xf32, #tpu.memory_space<vmem>>, vector<1x64x64xf32>
    %1 = vector.shape_cast %0 : vector<1x64x64xf32> to vector<64x64xf32>
    %c0_2 = arith.constant 0 : index
    %c0_3 = arith.constant 0 : index
    %2 = vector.load %arg2[%c0_2, %c0_3] : memref<1x64xf32, #tpu.memory_space<vmem>>, vector<1x64xf32>
    %3 = vector.broadcast %2 : vector<1x64xf32> to vector<64x64xf32>
    %4 = arith.mulf %1, %3 : vector<64x64xf32>
    %c0_4 = arith.constant 0 : index
    %c0_5 = arith.constant 0 : index
    %5 = vector.load %arg3[%c0_4, %c0_5] : memref<1x64xf32, #tpu.memory_space<vmem>>, vector<1x64xf32>
    %6 = vector.broadcast %5 : vector<1x64xf32> to vector<64x64xf32>
    %7 = arith.addf %4, %6 : vector<64x64xf32>
    %cst = arith.constant 0.000000e+00 : f32
    %8 = vector.broadcast %cst : f32 to vector<64x64xf32>
    %9 = arith.maximumf %7, %8 : vector<64x64xf32>
    %cst_6 = arith.constant 0.000000e+00 : f32
    %10 = vector.broadcast %cst_6 : f32 to vector<1x64xf32>
    %c0_7 = arith.constant 0 : index
    %c0_8 = arith.constant 0 : index
    %11 = vector.load %arg11[%c0_7, %c0_8] : memref<72x64xf32, #tpu.memory_space<vmem>>, vector<1x64xf32>
    tpu.vector_store %arg11[%c0_7, %c0_8], %10 {strides = array<i32>} : memref<72x64xf32, #tpu.memory_space<vmem>>, vector<1x64xf32>,
    %12 = vector.extract_strided_slice %9 {offsets = [0, 0], sizes = [16, 64], strides = [1, 1]} : vector<64x64xf32> to vector<16x64xf32>
    %c1 = arith.constant 1 : index
    %c0_9 = arith.constant 0 : index
    %13 = vector.load %arg11[%c1, %c0_9] : memref<72x64xf32, #tpu.memory_space<vmem>>, vector<16x64xf32>
    tpu.vector_store %arg11[%c1, %c0_9], %12 {strides = array<i32>} : memref<72x64xf32, #tpu.memory_space<vmem>>, vector<16x64xf32>,
    %c17 = arith.constant 17 : index
    %c0_10 = arith.constant 0 : index
    %14 = vector.load %arg11[%c17, %c0_10] : memref<72x64xf32, #tpu.memory_space<vmem>>, vector<1x64xf32>
    tpu.vector_store %arg11[%c17, %c0_10], %10 {strides = array<i32>} : memref<72x64xf32, #tpu.memory_space<vmem>>, vector<1x64xf32>,
    %c18 = arith.constant 18 : index
    %c0_11 = arith.constant 0 : index
    %15 = vector.load %arg11[%c18, %c0_11] : memref<72x64xf32, #tpu.memory_space<vmem>>, vector<1x64xf32>
    tpu.vector_store %arg11[%c18, %c0_11], %10 {strides = array<i32>} : memref<72x64xf32, #tpu.memory_space<vmem>>, vector<1x64xf32>,
    %16 = vector.extract_strided_slice %9 {offsets = [16, 0], sizes = [16, 64], strides = [1, 1]} : vector<64x64xf32> to vector<16x64xf32>
    %c19 = arith.constant 19 : index
    %c0_12 = arith.constant 0 : index
    %17 = vector.load %arg11[%c19, %c0_12] : memref<72x64xf32, #tpu.memory_space<vmem>>, vector<16x64xf32>
    tpu.vector_store %arg11[%c19, %c0_12], %16 {strides = array<i32>} : memref<72x64xf32, #tpu.memory_space<vmem>>, vector<16x64xf32>,
    %c35 = arith.constant 35 : index
    %c0_13 = arith.constant 0 : index
    %18 = vector.load %arg11[%c35, %c0_13] : memref<72x64xf32, #tpu.memory_space<vmem>>, vector<1x64xf32>
    tpu.vector_store %arg11[%c35, %c0_13], %10 {strides = array<i32>} : memref<72x64xf32, #tpu.memory_space<vmem>>, vector<1x64xf32>,
    %c36 = arith.constant 36 : index
    %c0_14 = arith.constant 0 : index
    %19 = vector.load %arg11[%c36, %c0_14] : memref<72x64xf32, #tpu.memory_space<vmem>>, vector<1x64xf32>
    tpu.vector_store %arg11[%c36, %c0_14], %10 {strides = array<i32>} : memref<72x64xf32, #tpu.memory_space<vmem>>, vector<1x64xf32>,
    %20 = vector.extract_strided_slice %9 {offsets = [32, 0], sizes = [16, 64], strides = [1, 1]} : vector<64x64xf32> to vector<16x64xf32>
    %c37 = arith.constant 37 : index
    %c0_15 = arith.constant 0 : index
    %21 = vector.load %arg11[%c37, %c0_15] : memref<72x64xf32, #tpu.memory_space<vmem>>, vector<16x64xf32>
    tpu.vector_store %arg11[%c37, %c0_15], %20 {strides = array<i32>} : memref<72x64xf32, #tpu.memory_space<vmem>>, vector<16x64xf32>,
    %c53 = arith.constant 53 : index
    %c0_16 = arith.constant 0 : index
    %22 = vector.load %arg11[%c53, %c0_16] : memref<72x64xf32, #tpu.memory_space<vmem>>, vector<1x64xf32>
    tpu.vector_store %arg11[%c53, %c0_16], %10 {strides = array<i32>} : memref<72x64xf32, #tpu.memory_space<vmem>>, vector<1x64xf32>,
    %c54 = arith.constant 54 : index
    %c0_17 = arith.constant 0 : index
    %23 = vector.load %arg11[%c54, %c0_17] : memref<72x64xf32, #tpu.memory_space<vmem>>, vector<1x64xf32>
    tpu.vector_store %arg11[%c54, %c0_17], %10 {strides = array<i32>} : memref<72x64xf32, #tpu.memory_space<vmem>>, vector<1x64xf32>,
    %24 = vector.extract_strided_slice %9 {offsets = [48, 0], sizes = [16, 64], strides = [1, 1]} : vector<64x64xf32> to vector<16x64xf32>
    %c55 = arith.constant 55 : index
    %c0_18 = arith.constant 0 : index
    %25 = vector.load %arg11[%c55, %c0_18] : memref<72x64xf32, #tpu.memory_space<vmem>>, vector<16x64xf32>
    tpu.vector_store %arg11[%c55, %c0_18], %24 {strides = array<i32>} : memref<72x64xf32, #tpu.memory_space<vmem>>, vector<16x64xf32>,
    %c71 = arith.constant 71 : index
    %c0_19 = arith.constant 0 : index
    %26 = vector.load %arg11[%c71, %c0_19] : memref<72x64xf32, #tpu.memory_space<vmem>>, vector<1x64xf32>
    tpu.vector_store %arg11[%c71, %c0_19], %10 {strides = array<i32>} : memref<72x64xf32, #tpu.memory_space<vmem>>, vector<1x64xf32>,
    %c0_20 = arith.constant 0 : index
    %c0_21 = arith.constant 0 : index
    %27 = vector.load %arg11[%c0_20, %c0_21] : memref<72x64xf32, #tpu.memory_space<vmem>>, vector<70x64xf32>
    %c0_22 = arith.constant 0 : index
    %c0_23 = arith.constant 0 : index
    %c0_24 = arith.constant 0 : index
    %28 = vector.load %arg4[%c0_22, %c0_23, %c0_24] : memref<3x64x128xf32, #tpu.memory_space<vmem>>, vector<1x64x128xf32>
    %29 = vector.shape_cast %28 : vector<1x64x128xf32> to vector<64x128xf32>
    %cst_25 = arith.constant dense<0.000000e+00> : vector<70x128xf32>
    %30 = tpu.matmul %27, %29, %cst_25 {dimension_numbers = #tpu.dot_dimension_numbers<[1], [0], [0], [1], [0, 0, 1, 1], [], []>} : vector<70x64xf32>, vector<64x128xf32>, vector<70x128xf32> -> vector<70x128xf32>
    %c1_26 = arith.constant 1 : index
    %c0_27 = arith.constant 0 : index
    %31 = vector.load %arg11[%c1_26, %c0_27] : memref<72x64xf32, #tpu.memory_space<vmem>>, vector<70x64xf32>
    %c1_28 = arith.constant 1 : index
    %c0_29 = arith.constant 0 : index
    %c0_30 = arith.constant 0 : index
    %32 = vector.load %arg4[%c1_28, %c0_29, %c0_30] : memref<3x64x128xf32, #tpu.memory_space<vmem>>, vector<1x64x128xf32>
    %33 = vector.shape_cast %32 : vector<1x64x128xf32> to vector<64x128xf32>
    %cst_31 = arith.constant dense<0.000000e+00> : vector<70x128xf32>
    %34 = tpu.matmul %31, %33, %cst_31 {dimension_numbers = #tpu.dot_dimension_numbers<[1], [0], [0], [1], [0, 0, 1, 1], [], []>} : vector<70x64xf32>, vector<64x128xf32>, vector<70x128xf32> -> vector<70x128xf32>
    %35 = arith.addf %30, %34 : vector<70x128xf32>
    %c2 = arith.constant 2 : index
    %c0_32 = arith.constant 0 : index
    %36 = vector.load %arg11[%c2, %c0_32] : memref<72x64xf32, #tpu.memory_space<vmem>>, vector<70x64xf32>
    %c2_33 = arith.constant 2 : index
    %c0_34 = arith.constant 0 : index
    %c0_35 = arith.constant 0 : index
    %37 = vector.load %arg4[%c2_33, %c0_34, %c0_35] : memref<3x64x128xf32, #tpu.memory_space<vmem>>, vector<1x64x128xf32>
    %38 = vector.shape_cast %37 : vector<1x64x128xf32> to vector<64x128xf32>
    %cst_36 = arith.constant dense<0.000000e+00> : vector<70x128xf32>
    %39 = tpu.matmul %36, %38, %cst_36 {dimension_numbers = #tpu.dot_dimension_numbers<[1], [0], [0], [1], [0, 0, 1, 1], [], []>} : vector<70x64xf32>, vector<64x128xf32>, vector<70x128xf32> -> vector<70x128xf32>
    %40 = arith.addf %35, %39 : vector<70x128xf32>
    %cst_37 = arith.constant 0.000000e+00 : f32
    %41 = vector.broadcast %cst_37 : f32 to vector<1x128xf32>
    %42 = vector.extract_strided_slice %40 {offsets = [0, 0], sizes = [16, 128], strides = [1, 1]} : vector<70x128xf32> to vector<16x128xf32>
    %c0_38 = arith.constant 0 : index
    %c0_39 = arith.constant 0 : index
    %c0_40 = arith.constant 0 : index
    %43 = vector.load %arg5[%c0_38, %c0_39, %c0_40] : memref<4x1x128xf32, #tpu.memory_space<vmem>>, vector<1x1x128xf32>
    %44 = vector.shape_cast %43 : vector<1x1x128xf32> to vector<1x128xf32>
    %45 = vector.broadcast %44 : vector<1x128xf32> to vector<16x128xf32>
    %46 = arith.mulf %42, %45 : vector<16x128xf32>
    %c0_41 = arith.constant 0 : index
    %c0_42 = arith.constant 0 : index
    %c0_43 = arith.constant 0 : index
    %47 = vector.load %arg6[%c0_41, %c0_42, %c0_43] : memref<4x1x128xf32, #tpu.memory_space<vmem>>, vector<1x1x128xf32>
    %48 = vector.shape_cast %47 : vector<1x1x128xf32> to vector<1x128xf32>
    %49 = vector.broadcast %48 : vector<1x128xf32> to vector<16x128xf32>
    %50 = arith.addf %46, %49 : vector<16x128xf32>
    %cst_44 = arith.constant 0.000000e+00 : f32
    %51 = vector.broadcast %cst_44 : f32 to vector<16x128xf32>
    %52 = arith.maximumf %50, %51 : vector<16x128xf32>
    %c0_45 = arith.constant 0 : index
    %c0_46 = arith.constant 0 : index
    %53 = vector.load %arg12[%c0_45, %c0_46] : memref<72x128xf32, #tpu.memory_space<vmem>>, vector<1x128xf32>
    tpu.vector_store %arg12[%c0_45, %c0_46], %41 {strides = array<i32>} : memref<72x128xf32, #tpu.memory_space<vmem>>, vector<1x128xf32>,
    %c1_47 = arith.constant 1 : index
    %c0_48 = arith.constant 0 : index
    %54 = vector.load %arg12[%c1_47, %c0_48] : memref<72x128xf32, #tpu.memory_space<vmem>>, vector<16x128xf32>
    tpu.vector_store %arg12[%c1_47, %c0_48], %52 {strides = array<i32>} : memref<72x128xf32, #tpu.memory_space<vmem>>, vector<16x128xf32>,
    %c17_49 = arith.constant 17 : index
    %c0_50 = arith.constant 0 : index
    %55 = vector.load %arg12[%c17_49, %c0_50] : memref<72x128xf32, #tpu.memory_space<vmem>>, vector<1x128xf32>
    tpu.vector_store %arg12[%c17_49, %c0_50], %41 {strides = array<i32>} : memref<72x128xf32, #tpu.memory_space<vmem>>, vector<1x128xf32>,
    %56 = vector.extract_strided_slice %40 {offsets = [18, 0], sizes = [16, 128], strides = [1, 1]} : vector<70x128xf32> to vector<16x128xf32>
    %c1_51 = arith.constant 1 : index
    %c0_52 = arith.constant 0 : index
    %c0_53 = arith.constant 0 : index
    %57 = vector.load %arg5[%c1_51, %c0_52, %c0_53] : memref<4x1x128xf32, #tpu.memory_space<vmem>>, vector<1x1x128xf32>
    %58 = vector.shape_cast %57 : vector<1x1x128xf32> to vector<1x128xf32>
    %59 = vector.broadcast %58 : vector<1x128xf32> to vector<16x128xf32>
    %60 = arith.mulf %56, %59 : vector<16x128xf32>
    %c1_54 = arith.constant 1 : index
    %c0_55 = arith.constant 0 : index
    %c0_56 = arith.constant 0 : index
    %61 = vector.load %arg6[%c1_54, %c0_55, %c0_56] : memref<4x1x128xf32, #tpu.memory_space<vmem>>, vector<1x1x128xf32>
    %62 = vector.shape_cast %61 : vector<1x1x128xf32> to vector<1x128xf32>
    %63 = vector.broadcast %62 : vector<1x128xf32> to vector<16x128xf32>
    %64 = arith.addf %60, %63 : vector<16x128xf32>
    %cst_57 = arith.constant 0.000000e+00 : f32
    %65 = vector.broadcast %cst_57 : f32 to vector<16x128xf32>
    %66 = arith.maximumf %64, %65 : vector<16x128xf32>
    %c18_58 = arith.constant 18 : index
    %c0_59 = arith.constant 0 : index
    %67 = vector.load %arg12[%c18_58, %c0_59] : memref<72x128xf32, #tpu.memory_space<vmem>>, vector<1x128xf32>
    tpu.vector_store %arg12[%c18_58, %c0_59], %41 {strides = array<i32>} : memref<72x128xf32, #tpu.memory_space<vmem>>, vector<1x128xf32>,
    %c19_60 = arith.constant 19 : index
    %c0_61 = arith.constant 0 : index
    %68 = vector.load %arg12[%c19_60, %c0_61] : memref<72x128xf32, #tpu.memory_space<vmem>>, vector<16x128xf32>
    tpu.vector_store %arg12[%c19_60, %c0_61], %66 {strides = array<i32>} : memref<72x128xf32, #tpu.memory_space<vmem>>, vector<16x128xf32>,
    %c35_62 = arith.constant 35 : index
    %c0_63 = arith.constant 0 : index
    %69 = vector.load %arg12[%c35_62, %c0_63] : memref<72x128xf32, #tpu.memory_space<vmem>>, vector<1x128xf32>
    tpu.vector_store %arg12[%c35_62, %c0_63], %41 {strides = array<i32>} : memref<72x128xf32, #tpu.memory_space<vmem>>, vector<1x128xf32>,
    %70 = vector.extract_strided_slice %40 {offsets = [36, 0], sizes = [16, 128], strides = [1, 1]} : vector<70x128xf32> to vector<16x128xf32>
    %c2_64 = arith.constant 2 : index
    %c0_65 = arith.constant 0 : index
    %c0_66 = arith.constant 0 : index
    %71 = vector.load %arg5[%c2_64, %c0_65, %c0_66] : memref<4x1x128xf32, #tpu.memory_space<vmem>>, vector<1x1x128xf32>
    %72 = vector.shape_cast %71 : vector<1x1x128xf32> to vector<1x128xf32>
    %73 = vector.broadcast %72 : vector<1x128xf32> to vector<16x128xf32>
    %74 = arith.mulf %70, %73 : vector<16x128xf32>
    %c2_67 = arith.constant 2 : index
    %c0_68 = arith.constant 0 : index
    %c0_69 = arith.constant 0 : index
    %75 = vector.load %arg6[%c2_67, %c0_68, %c0_69] : memref<4x1x128xf32, #tpu.memory_space<vmem>>, vector<1x1x128xf32>
    %76 = vector.shape_cast %75 : vector<1x1x128xf32> to vector<1x128xf32>
    %77 = vector.broadcast %76 : vector<1x128xf32> to vector<16x128xf32>
    %78 = arith.addf %74, %77 : vector<16x128xf32>
    %cst_70 = arith.constant 0.000000e+00 : f32
    %79 = vector.broadcast %cst_70 : f32 to vector<16x128xf32>
    %80 = arith.maximumf %78, %79 : vector<16x128xf32>
    %c36_71 = arith.constant 36 : index
    %c0_72 = arith.constant 0 : index
    %81 = vector.load %arg12[%c36_71, %c0_72] : memref<72x128xf32, #tpu.memory_space<vmem>>, vector<1x128xf32>
    tpu.vector_store %arg12[%c36_71, %c0_72], %41 {strides = array<i32>} : memref<72x128xf32, #tpu.memory_space<vmem>>, vector<1x128xf32>,
    %c37_73 = arith.constant 37 : index
    %c0_74 = arith.constant 0 : index
    %82 = vector.load %arg12[%c37_73, %c0_74] : memref<72x128xf32, #tpu.memory_space<vmem>>, vector<16x128xf32>
    tpu.vector_store %arg12[%c37_73, %c0_74], %80 {strides = array<i32>} : memref<72x128xf32, #tpu.memory_space<vmem>>, vector<16x128xf32>,
    %c53_75 = arith.constant 53 : index
    %c0_76 = arith.constant 0 : index
    %83 = vector.load %arg12[%c53_75, %c0_76] : memref<72x128xf32, #tpu.memory_space<vmem>>, vector<1x128xf32>
    tpu.vector_store %arg12[%c53_75, %c0_76], %41 {strides = array<i32>} : memref<72x128xf32, #tpu.memory_space<vmem>>, vector<1x128xf32>,
    %84 = vector.extract_strided_slice %40 {offsets = [54, 0], sizes = [16, 128], strides = [1, 1]} : vector<70x128xf32> to vector<16x128xf32>
    %c3 = arith.constant 3 : index
    %c0_77 = arith.constant 0 : index
    %c0_78 = arith.constant 0 : index
    %85 = vector.load %arg5[%c3, %c0_77, %c0_78] : memref<4x1x128xf32, #tpu.memory_space<vmem>>, vector<1x1x128xf32>
    %86 = vector.shape_cast %85 : vector<1x1x128xf32> to vector<1x128xf32>
    %87 = vector.broadcast %86 : vector<1x128xf32> to vector<16x128xf32>
    %88 = arith.mulf %84, %87 : vector<16x128xf32>
    %c3_79 = arith.constant 3 : index
    %c0_80 = arith.constant 0 : index
    %c0_81 = arith.constant 0 : index
    %89 = vector.load %arg6[%c3_79, %c0_80, %c0_81] : memref<4x1x128xf32, #tpu.memory_space<vmem>>, vector<1x1x128xf32>
    %90 = vector.shape_cast %89 : vector<1x1x128xf32> to vector<1x128xf32>
    %91 = vector.broadcast %90 : vector<1x128xf32> to vector<16x128xf32>
    %92 = arith.addf %88, %91 : vector<16x128xf32>
    %cst_82 = arith.constant 0.000000e+00 : f32
    %93 = vector.broadcast %cst_82 : f32 to vector<16x128xf32>
    %94 = arith.maximumf %92, %93 : vector<16x128xf32>
    %c54_83 = arith.constant 54 : index
    %c0_84 = arith.constant 0 : index
    %95 = vector.load %arg12[%c54_83, %c0_84] : memref<72x128xf32, #tpu.memory_space<vmem>>, vector<1x128xf32>
    tpu.vector_store %arg12[%c54_83, %c0_84], %41 {strides = array<i32>} : memref<72x128xf32, #tpu.memory_space<vmem>>, vector<1x128xf32>,
    %c55_85 = arith.constant 55 : index
    %c0_86 = arith.constant 0 : index
    %96 = vector.load %arg12[%c55_85, %c0_86] : memref<72x128xf32, #tpu.memory_space<vmem>>, vector<16x128xf32>
    tpu.vector_store %arg12[%c55_85, %c0_86], %94 {strides = array<i32>} : memref<72x128xf32, #tpu.memory_space<vmem>>, vector<16x128xf32>,
    %c71_87 = arith.constant 71 : index
    %c0_88 = arith.constant 0 : index
    %97 = vector.load %arg12[%c71_87, %c0_88] : memref<72x128xf32, #tpu.memory_space<vmem>>, vector<1x128xf32>
    tpu.vector_store %arg12[%c71_87, %c0_88], %41 {strides = array<i32>} : memref<72x128xf32, #tpu.memory_space<vmem>>, vector<1x128xf32>,
    %c0_89 = arith.constant 0 : index
    %c0_90 = arith.constant 0 : index
    %98 = vector.load %arg12[%c0_89, %c0_90] : memref<72x128xf32, #tpu.memory_space<vmem>>, vector<70x128xf32>
    %c0_91 = arith.constant 0 : index
    %c0_92 = arith.constant 0 : index
    %c0_93 = arith.constant 0 : index
    %99 = vector.load %arg7[%c0_91, %c0_92, %c0_93] : memref<3x128x128xf32, #tpu.memory_space<vmem>>, vector<1x128x128xf32>
    %100 = vector.shape_cast %99 : vector<1x128x128xf32> to vector<128x128xf32>
    %cst_94 = arith.constant dense<0.000000e+00> : vector<70x128xf32>
    %101 = tpu.matmul %98, %100, %cst_94 {dimension_numbers = #tpu.dot_dimension_numbers<[1], [0], [0], [1], [0, 0, 1, 1], [], []>} : vector<70x128xf32>, vector<128x128xf32>, vector<70x128xf32> -> vector<70x128xf32>
    %c1_95 = arith.constant 1 : index
    %c0_96 = arith.constant 0 : index
    %102 = vector.load %arg12[%c1_95, %c0_96] : memref<72x128xf32, #tpu.memory_space<vmem>>, vector<70x128xf32>
    %c1_97 = arith.constant 1 : index
    %c0_98 = arith.constant 0 : index
    %c0_99 = arith.constant 0 : index
    %103 = vector.load %arg7[%c1_97, %c0_98, %c0_99] : memref<3x128x128xf32, #tpu.memory_space<vmem>>, vector<1x128x128xf32>
    %104 = vector.shape_cast %103 : vector<1x128x128xf32> to vector<128x128xf32>
    %cst_100 = arith.constant dense<0.000000e+00> : vector<70x128xf32>
    %105 = tpu.matmul %102, %104, %cst_100 {dimension_numbers = #tpu.dot_dimension_numbers<[1], [0], [0], [1], [0, 0, 1, 1], [], []>} : vector<70x128xf32>, vector<128x128xf32>, vector<70x128xf32> -> vector<70x128xf32>
    %106 = arith.addf %101, %105 : vector<70x128xf32>
    %c2_101 = arith.constant 2 : index
    %c0_102 = arith.constant 0 : index
    %107 = vector.load %arg12[%c2_101, %c0_102] : memref<72x128xf32, #tpu.memory_space<vmem>>, vector<70x128xf32>
    %c2_103 = arith.constant 2 : index
    %c0_104 = arith.constant 0 : index
    %c0_105 = arith.constant 0 : index
    %108 = vector.load %arg7[%c2_103, %c0_104, %c0_105] : memref<3x128x128xf32, #tpu.memory_space<vmem>>, vector<1x128x128xf32>
    %109 = vector.shape_cast %108 : vector<1x128x128xf32> to vector<128x128xf32>
    %cst_106 = arith.constant dense<0.000000e+00> : vector<70x128xf32>
    %110 = tpu.matmul %107, %109, %cst_106 {dimension_numbers = #tpu.dot_dimension_numbers<[1], [0], [0], [1], [0, 0, 1, 1], [], []>} : vector<70x128xf32>, vector<128x128xf32>, vector<70x128xf32> -> vector<70x128xf32>
    %111 = arith.addf %106, %110 : vector<70x128xf32>
    %c0_107 = arith.constant 0 : index
    %c0_108 = arith.constant 0 : index
    %112 = vector.load %arg9[%c0_107, %c0_108] : memref<64x128xf32, #tpu.memory_space<vmem>>, vector<64x128xf32>
    %cst_109 = arith.constant dense<0.000000e+00> : vector<64x128xf32>
    %113 = tpu.matmul %1, %112, %cst_109 {dimension_numbers = #tpu.dot_dimension_numbers<[1], [0], [0], [1], [0, 0, 1, 1], [], []>} : vector<64x64xf32>, vector<64x128xf32>, vector<64x128xf32> -> vector<64x128xf32>
    %114 = vector.extract_strided_slice %111 {offsets = [0, 0], sizes = [16, 128], strides = [1, 1]} : vector<70x128xf32> to vector<16x128xf32>
    %c0_110 = arith.constant 0 : index
    %c0_111 = arith.constant 0 : index
    %115 = vector.load %arg8[%c0_110, %c0_111] : memref<1x128xf32, #tpu.memory_space<vmem>>, vector<1x128xf32>
    %116 = vector.broadcast %115 : vector<1x128xf32> to vector<16x128xf32>
    %117 = arith.addf %114, %116 : vector<16x128xf32>
    %118 = vector.extract_strided_slice %113 {offsets = [0, 0], sizes = [16, 128], strides = [1, 1]} : vector<64x128xf32> to vector<16x128xf32>
    %119 = arith.addf %117, %118 : vector<16x128xf32>
    %c0_112 = arith.constant 0 : index
    %c0_113 = arith.constant 0 : index
    %c0_114 = arith.constant 0 : index
    %120 = vector.load %arg10[%c0_112, %c0_113, %c0_114] : memref<1x64x128xf32, #tpu.memory_space<vmem>>, vector<1x16x128xf32>
    %121 = vector.shape_cast %120 : vector<1x16x128xf32> to vector<16x128xf32>
    %122 = vector.shape_cast %119 : vector<16x128xf32> to vector<1x16x128xf32>
    tpu.vector_store %arg10[%c0_112, %c0_113, %c0_114], %122 {strides = array<i32>} : memref<1x64x128xf32, #tpu.memory_space<vmem>>, vector<1x16x128xf32>,
    %123 = vector.extract_strided_slice %111 {offsets = [18, 0], sizes = [16, 128], strides = [1, 1]} : vector<70x128xf32> to vector<16x128xf32>
    %c0_115 = arith.constant 0 : index
    %c0_116 = arith.constant 0 : index
    %124 = vector.load %arg8[%c0_115, %c0_116] : memref<1x128xf32, #tpu.memory_space<vmem>>, vector<1x128xf32>
    %125 = vector.broadcast %124 : vector<1x128xf32> to vector<16x128xf32>
    %126 = arith.addf %123, %125 : vector<16x128xf32>
    %127 = vector.extract_strided_slice %113 {offsets = [16, 0], sizes = [16, 128], strides = [1, 1]} : vector<64x128xf32> to vector<16x128xf32>
    %128 = arith.addf %126, %127 : vector<16x128xf32>
    %c0_117 = arith.constant 0 : index
    %c16 = arith.constant 16 : index
    %c0_118 = arith.constant 0 : index
    %129 = vector.load %arg10[%c0_117, %c16, %c0_118] : memref<1x64x128xf32, #tpu.memory_space<vmem>>, vector<1x16x128xf32>
    %130 = vector.shape_cast %129 : vector<1x16x128xf32> to vector<16x128xf32>
    %131 = vector.shape_cast %128 : vector<16x128xf32> to vector<1x16x128xf32>
    tpu.vector_store %arg10[%c0_117, %c16, %c0_118], %131 {strides = array<i32>} : memref<1x64x128xf32, #tpu.memory_space<vmem>>, vector<1x16x128xf32>,
    %132 = vector.extract_strided_slice %111 {offsets = [36, 0], sizes = [16, 128], strides = [1, 1]} : vector<70x128xf32> to vector<16x128xf32>
    %c0_119 = arith.constant 0 : index
    %c0_120 = arith.constant 0 : index
    %133 = vector.load %arg8[%c0_119, %c0_120] : memref<1x128xf32, #tpu.memory_space<vmem>>, vector<1x128xf32>
    %134 = vector.broadcast %133 : vector<1x128xf32> to vector<16x128xf32>
    %135 = arith.addf %132, %134 : vector<16x128xf32>
    %136 = vector.extract_strided_slice %113 {offsets = [32, 0], sizes = [16, 128], strides = [1, 1]} : vector<64x128xf32> to vector<16x128xf32>
    %137 = arith.addf %135, %136 : vector<16x128xf32>
    %c0_121 = arith.constant 0 : index
    %c32 = arith.constant 32 : index
    %c0_122 = arith.constant 0 : index
    %138 = vector.load %arg10[%c0_121, %c32, %c0_122] : memref<1x64x128xf32, #tpu.memory_space<vmem>>, vector<1x16x128xf32>
    %139 = vector.shape_cast %138 : vector<1x16x128xf32> to vector<16x128xf32>
    %140 = vector.shape_cast %137 : vector<16x128xf32> to vector<1x16x128xf32>
    tpu.vector_store %arg10[%c0_121, %c32, %c0_122], %140 {strides = array<i32>} : memref<1x64x128xf32, #tpu.memory_space<vmem>>, vector<1x16x128xf32>,
    %141 = vector.extract_strided_slice %111 {offsets = [54, 0], sizes = [16, 128], strides = [1, 1]} : vector<70x128xf32> to vector<16x128xf32>
    %c0_123 = arith.constant 0 : index
    %c0_124 = arith.constant 0 : index
    %142 = vector.load %arg8[%c0_123, %c0_124] : memref<1x128xf32, #tpu.memory_space<vmem>>, vector<1x128xf32>
    %143 = vector.broadcast %142 : vector<1x128xf32> to vector<16x128xf32>
    %144 = arith.addf %141, %143 : vector<16x128xf32>
    %145 = vector.extract_strided_slice %113 {offsets = [48, 0], sizes = [16, 128], strides = [1, 1]} : vector<64x128xf32> to vector<16x128xf32>
    %146 = arith.addf %144, %145 : vector<16x128xf32>
    %c0_125 = arith.constant 0 : index
    %c48 = arith.constant 48 : index
    %c0_126 = arith.constant 0 : index
    %147 = vector.load %arg10[%c0_125, %c48, %c0_126] : memref<1x64x128xf32, #tpu.memory_space<vmem>>, vector<1x16x128xf32>
    %148 = vector.shape_cast %147 : vector<1x16x128xf32> to vector<16x128xf32>
    %149 = vector.shape_cast %146 : vector<16x128xf32> to vector<1x16x128xf32>
    tpu.vector_store %arg10[%c0_125, %c48, %c0_126], %149 {strides = array<i32>} : memref<1x64x128xf32, #tpu.memory_space<vmem>>, vector<1x16x128xf32>,
    return
  }
  func.func @transform_0(%arg0: i32) -> (i32, i32, i32) {
    %c0_i32 = arith.constant 0 : i32
    %c0_i32_0 = arith.constant 0 : i32
    %c0_i32_1 = arith.constant 0 : i32
    return %arg0, %c0_i32, %c0_i32_0 : i32, i32, i32
  }
  func.func @transform_1(%arg0: i32) -> (i32, i32) {
    %c0_i32 = arith.constant 0 : i32
    %c0_i32_0 = arith.constant 0 : i32
    %c0_i32_1 = arith.constant 0 : i32
    return %c0_i32, %c0_i32_0 : i32, i32
  }
  func.func @transform_2(%arg0: i32) -> (i32, i32) {
    %c0_i32 = arith.constant 0 : i32
    %c0_i32_0 = arith.constant 0 : i32
    %c0_i32_1 = arith.constant 0 : i32
    return %c0_i32, %c0_i32_0 : i32, i32
  }
  func.func @transform_3(%arg0: i32) -> (i32, i32, i32) {
    %c0_i32 = arith.constant 0 : i32
    %c0_i32_0 = arith.constant 0 : i32
    %c0_i32_1 = arith.constant 0 : i32
    %c0_i32_2 = arith.constant 0 : i32
    return %c0_i32, %c0_i32_0, %c0_i32_1 : i32, i32, i32
  }
  func.func @transform_4(%arg0: i32) -> (i32, i32, i32) {
    %c0_i32 = arith.constant 0 : i32
    %c0_i32_0 = arith.constant 0 : i32
    %c0_i32_1 = arith.constant 0 : i32
    return %arg0, %c0_i32, %c0_i32_0 : i32, i32, i32
  }
  func.func @transform_5(%arg0: i32) -> (i32, i32, i32) {
    %c0_i32 = arith.constant 0 : i32
    %c0_i32_0 = arith.constant 0 : i32
    %c0_i32_1 = arith.constant 0 : i32
    return %arg0, %c0_i32, %c0_i32_0 : i32, i32, i32
  }
  func.func @transform_6(%arg0: i32) -> (i32, i32, i32) {
    %c0_i32 = arith.constant 0 : i32
    %c0_i32_0 = arith.constant 0 : i32
    %c0_i32_1 = arith.constant 0 : i32
    %c0_i32_2 = arith.constant 0 : i32
    return %c0_i32, %c0_i32_0, %c0_i32_1 : i32, i32, i32
  }
  func.func @transform_7(%arg0: i32) -> (i32, i32) {
    %c0_i32 = arith.constant 0 : i32
    %c0_i32_0 = arith.constant 0 : i32
    %c0_i32_1 = arith.constant 0 : i32
    return %c0_i32, %c0_i32_0 : i32, i32
  }
  func.func @transform_8(%arg0: i32) -> (i32, i32) {
    %c0_i32 = arith.constant 0 : i32
    %c0_i32_0 = arith.constant 0 : i32
    %c0_i32_1 = arith.constant 0 : i32
    return %c0_i32, %c0_i32_0 : i32, i32
  }
  func.func @transform_9(%arg0: i32) -> (i32, i32, i32) {
    %c0_i32 = arith.constant 0 : i32
    %c0_i32_0 = arith.constant 0 : i32
    %c0_i32_1 = arith.constant 0 : i32
    return %arg0, %c0_i32, %c0_i32_0 : i32, i32, i32
  }
}

</mosaic_0001>

<llo_original>
// kernel: tpu_custom_call.1
$region0: #{tpu_custom_call.1}
  #allocation0 [shape = 'u32[]', space=smem, size = 0x4, offset = 0x4, fixed_abs, tag = 'smem constant byte address 0x4 - core index']
  #allocation1 [shape = 'u32[144,128]{1,0:T(1,128)}', space=vmem, size = 0x12000, scoped, tag = 'internal scratch']
  #allocation2 [shape = 'f32[72,64]{1,0:T(8,128)}', space=vmem, size = 0x9000, scoped, tag = 'scratch operand']
  #allocation3 [shape = 'f32[72,128]{1,0:T(8,128)}', space=vmem, size = 0x9000, scoped, tag = 'scratch operand']
  %s0 = inlined_call_operand.hbm [shape: f32[4,64,64], index: 0, kind: input, shape index: {}]
  %s1 = inlined_call_operand.vmem [shape: f32[1,64], index: 1, kind: input, shape index: {}]
  %s2 = inlined_call_operand.vmem [shape: f32[1,64], index: 2, kind: input, shape index: {}]
  %s3 = inlined_call_operand.hbm [shape: f32[3,64,128], index: 3, kind: input, shape index: {}]
  %s4 = inlined_call_operand.hbm [shape: f32[16,1,128], index: 4, kind: input, shape index: {}]
  %s5 = inlined_call_operand.hbm [shape: f32[16,1,128], index: 5, kind: input, shape index: {}]
  %s6 = inlined_call_operand.hbm [shape: f32[3,128,128], index: 6, kind: input, shape index: {}]
  %s7 = inlined_call_operand.vmem [shape: f32[1,128], index: 7, kind: input, shape index: {}]
  %s8 = inlined_call_operand.hbm [shape: f32[64,128], index: 8, kind: input, shape index: {}]
  %s9 = inlined_call_operand.hbm [shape: f32[4,64,128], index: 9, kind: output, shape index: {}]
  %s10 = sld [smem:[#allocation0]]
  $region93: #{tpu_custom_call.1} parent=0
    _
  %s12 = ssub.s32 1, %s10
  %s13 = scalar_select 0, %s12, %s10
  $region1: #{tpu_custom_call.1} parent=0
    #allocation4 [shape = 'u8[65536]{0}', space=vmem, size = 0x10000, scoped, tag = 'input window, operand 0']
    #allocation5 [shape = 's32[2]{0}', space=sflag, size = 0x8, scoped, tag = 'scoped memory for tpu_custom_call.1']
    #allocation6 [shape = 's32[2]{0}', space=sflag, size = 0x8, scoped, tag = 'scoped memory for tpu_custom_call.1']
    #allocation7 [shape = 'u8[98304]{0}', space=vmem, size = 0x18000, scoped, tag = 'input window, operand 3, single buffered']
    #allocation8 [shape = 's32[1]{0}', space=sflag, size = 0x4, scoped, tag = 'scoped memory for tpu_custom_call.1']
    #allocation9 [shape = 'u8[4096]{0}', space=vmem, size = 0x1000, scoped, tag = 'input window, operand 4']
    #allocation10 [shape = 'u8[4096]{0}', space=vmem, size = 0x1000, scoped, tag = 'input window, operand 5']
    #allocation11 [shape = 'u8[196608]{0}', space=vmem, size = 0x30000, scoped, tag = 'input window, operand 6, single buffered']
    #allocation12 [shape = 'u8[32768]{0}', space=vmem, size = 0x8000, scoped, tag = 'input window, operand 8, single buffered']
    #allocation13 [shape = 's32[1]{0}', space=sflag, size = 0x4, scoped, tag = 'scoped memory for tpu_custom_call.1']
    #allocation14 [shape = 'u8[65536]{0}', space=vmem, size = 0x10000, scoped, tag = 'output window, operand 0']
    %14 = vsyncpa [#allocation5], 0
    %s15 = scalar_lea.sflag [#allocation5], 1
    %16 = vsyncpa %s15, 0
    %17 = vsyncpa [#allocation8], 0
    %18 = vsyncpa [#allocation13], 0
    %19 = vsyncpa [#allocation6], 0
    %s20 = scalar_lea.sflag [#allocation6], 1
    %21 = vsyncpa %s20, 0
    loop: start=0, step=1, limit=6
    $region2: #{tpu_custom_call.1} parent=1 // loop_pre_header
      _
    $region3: #{tpu_custom_call.1} parent=1 // loop_header
      %s23 = sphi 0, %s27
      %p24 = scmp.ge.s32.totalorder %s23, 6
      %s33 = sphi 0, %s35
      %s36 = sphi 0, %s33
      %s37 = sphi 0, %s36
      %s53 = sphi 0, %s37
      %s57 = sphi 0, %s57
      %s59 = sphi 0, %s57
      %s60 = sphi 0, %s59
      %s74 = sphi 0, %s60
      %s78 = sphi 0, %s78
      %s80 = sphi 0, %s78
      %s81 = sphi 0, %s80
      %s95 = sphi 0, %s81
      %s99 = sphi 0, %s99
      %s101 = sphi 0, %s99
      %s102 = sphi 0, %s101
      %s116 = sphi 0, %s102
      %s122 = sphi 0, %s124
      %s125 = sphi 0, %s122
      %s126 = sphi 0, %s125
      %s142 = sphi 0, %s126
      %s148 = sphi 0, %s150
      %s151 = sphi 0, %s148
      %s152 = sphi 0, %s151
      %s168 = sphi 0, %s152
      %s172 = sphi 0, %s172
      %s174 = sphi 0, %s172
      %s175 = sphi 0, %s174
      %s189 = sphi 0, %s175
      %s193 = sphi 0, %s193
      %s195 = sphi 0, %s193
      %s196 = sphi 0, %s195
      %s210 = sphi 0, %s196
      %s214 = sphi 0, %s214
      %s216 = sphi 0, %s214
      %s217 = sphi 0, %s216
      %s231 = sphi 0, %s217
      %s237 = sphi 0, %s239
      %s240 = sphi 0, %s237
      %s241 = sphi 0, %s240
      %s257 = sphi 0, %s241
    $region4: #{tpu_custom_call.1} parent=1 // loop_header_branch
      %26 = sbr.rel (%p24) target = $region8
    $region5: #{tpu_custom_call.1} parent=1 // loop_body
      %s28 = ssub.s32 %s23, 1
      %s29 = ssub.s32 %s23, 2
      %s30 = sadd.s32 %s23, 1
      %s31 = ssub.s32 %s23, %s30
      %p32 = scmp.eq.s32.totalorder %s31, 0
      %s34 = sadd.s32 %s33, 1
      %s35 = scalar_select %p32, %s33, %s34
      %p38 = pneg %p32
      %p39 = scmp.eq.s32.totalorder %s23, 3
      %p40 = por %p38, %p39
      %p41 = scmp.ne.s32.totalorder %s33, %s36
      %p42 = scmp.eq.s32.totalorder %s23, 0
      %p43 = por %p41, %p42
      %p44 = scmp.ne.s32.totalorder %s33, %s36
      %p45 = scmp.eq.s32.totalorder %s28, 3
      %p46 = por %p44, %p45
      %p47 = scmp.ne.s32.totalorder %s36, %s37
      %p48 = scmp.eq.s32.totalorder %s28, 0
      %p49 = por %p47, %p48
      %p50 = scmp.ne.s32.totalorder %s36, %s37
      %p51 = scmp.eq.s32.totalorder %s29, 3
      %p52 = por %p50, %p51
      %p54 = scmp.ne.s32.totalorder %s37, %s53
      %p55 = scmp.eq.s32.totalorder %s29, 0
      %p56 = por %p54, %p55
      %s58 = sadd.s32 %s57, 1
      %p61 = scmp.eq.s32.totalorder %s23, 3
      %p62 = scmp.ne.s32.totalorder %s57, %s59
      %p63 = scmp.eq.s32.totalorder %s23, 0
      %p64 = por %p62, %p63
      %p65 = scmp.ne.s32.totalorder %s57, %s59
      %p66 = scmp.eq.s32.totalorder %s28, 3
      %p67 = por %p65, %p66
      %p68 = scmp.ne.s32.totalorder %s59, %s60
      %p69 = scmp.eq.s32.totalorder %s28, 0
      %p70 = por %p68, %p69
      %p71 = scmp.ne.s32.totalorder %s59, %s60
      %p72 = scmp.eq.s32.totalorder %s29, 3
      %p73 = por %p71, %p72
      %p75 = scmp.ne.s32.totalorder %s60, %s74
      %p76 = scmp.eq.s32.totalorder %s29, 0
      %p77 = por %p75, %p76
      %s79 = sadd.s32 %s78, 1
      %p82 = scmp.eq.s32.totalorder %s23, 3
      %p83 = scmp.ne.s32.totalorder %s78, %s80
      %p84 = scmp.eq.s32.totalorder %s23, 0
      %p85 = por %p83, %p84
      %p86 = scmp.ne.s32.totalorder %s78, %s80
      %p87 = scmp.eq.s32.totalorder %s28, 3
      %p88 = por %p86, %p87
      %p89 = scmp.ne.s32.totalorder %s80, %s81
      %p90 = scmp.eq.s32.totalorder %s28, 0
      %p91 = por %p89, %p90
      %p92 = scmp.ne.s32.totalorder %s80, %s81
      %p93 = scmp.eq.s32.totalorder %s29, 3
      %p94 = por %p92, %p93
      %p96 = scmp.ne.s32.totalorder %s81, %s95
      %p97 = scmp.eq.s32.totalorder %s29, 0
      %p98 = por %p96, %p97
      %s100 = sadd.s32 %s99, 1
      %p103 = scmp.eq.s32.totalorder %s23, 3
      %p104 = scmp.ne.s32.totalorder %s99, %s101
      %p105 = scmp.eq.s32.totalorder %s23, 0
      %p106 = por %p104, %p105
      %p107 = scmp.ne.s32.totalorder %s99, %s101
      %p108 = scmp.eq.s32.totalorder %s28, 3
      %p109 = por %p107, %p108
      %p110 = scmp.ne.s32.totalorder %s101, %s102
      %p111 = scmp.eq.s32.totalorder %s28, 0
      %p112 = por %p110, %p111
      %p113 = scmp.ne.s32.totalorder %s101, %s102
      %p114 = scmp.eq.s32.totalorder %s29, 3
      %p115 = por %p113, %p114
      %p117 = scmp.ne.s32.totalorder %s102, %s116
      %p118 = scmp.eq.s32.totalorder %s29, 0
      %p119 = por %p117, %p118
      %s120 = ssub.s32 %s23, %s30
      %p121 = scmp.eq.s32.totalorder %s120, 0
      %s123 = sadd.s32 %s122, 1
      %s124 = scalar_select %p121, %s122, %s123
      %p127 = pneg %p121
      %p128 = scmp.eq.s32.totalorder %s23, 3
      %p129 = por %p127, %p128
      %p130 = scmp.ne.s32.totalorder %s122, %s125
      %p131 = scmp.eq.s32.totalorder %s23, 0
      %p132 = por %p130, %p131
      %p133 = scmp.ne.s32.totalorder %s122, %s125
      %p134 = scmp.eq.s32.totalorder %s28, 3
      %p135 = por %p133, %p134
      %p136 = scmp.ne.s32.totalorder %s125, %s126
      %p137 = scmp.eq.s32.totalorder %s28, 0
      %p138 = por %p136, %p137
      %p139 = scmp.ne.s32.totalorder %s125, %s126
      %p140 = scmp.eq.s32.totalorder %s29, 3
      %p141 = por %p139, %p140
      %p143 = scmp.ne.s32.totalorder %s126, %s142
      %p144 = scmp.eq.s32.totalorder %s29, 0
      %p145 = por %p143, %p144
      %s146 = ssub.s32 %s23, %s30
      %p147 = scmp.eq.s32.totalorder %s146, 0
      %s149 = sadd.s32 %s148, 1
      %s150 = scalar_select %p147, %s148, %s149
      %p153 = pneg %p147
      %p154 = scmp.eq.s32.totalorder %s23, 3
      %p155 = por %p153, %p154
      %p156 = scmp.ne.s32.totalorder %s148, %s151
      %p157 = scmp.eq.s32.totalorder %s23, 0
      %p158 = por %p156, %p157
      %p159 = scmp.ne.s32.totalorder %s148, %s151
      %p160 = scmp.eq.s32.totalorder %s28, 3
      %p161 = por %p159, %p160
      %p162 = scmp.ne.s32.totalorder %s151, %s152
      %p163 = scmp.eq.s32.totalorder %s28, 0
      %p164 = por %p162, %p163
      %p165 = scmp.ne.s32.totalorder %s151, %s152
      %p166 = scmp.eq.s32.totalorder %s29, 3
      %p167 = por %p165, %p166
      %p169 = scmp.ne.s32.totalorder %s152, %s168
      %p170 = scmp.eq.s32.totalorder %s29, 0
      %p171 = por %p169, %p170
      %s173 = sadd.s32 %s172, 1
      %p176 = scmp.eq.s32.totalorder %s23, 3
      %p177 = scmp.ne.s32.totalorder %s172, %s174
      %p178 = scmp.eq.s32.totalorder %s23, 0
      %p179 = por %p177, %p178
      %p180 = scmp.ne.s32.totalorder %s172, %s174
      %p181 = scmp.eq.s32.totalorder %s28, 3
      %p182 = por %p180, %p181
      %p183 = scmp.ne.s32.totalorder %s174, %s175
      %p184 = scmp.eq.s32.totalorder %s28, 0
      %p185 = por %p183, %p184
      %p186 = scmp.ne.s32.totalorder %s174, %s175
      %p187 = scmp.eq.s32.totalorder %s29, 3
      %p188 = por %p186, %p187
      %p190 = scmp.ne.s32.totalorder %s175, %s189
      %p191 = scmp.eq.s32.totalorder %s29, 0
      %p192 = por %p190, %p191
      %s194 = sadd.s32 %s193, 1
      %p197 = scmp.eq.s32.totalorder %s23, 3
      %p198 = scmp.ne.s32.totalorder %s193, %s195
      %p199 = scmp.eq.s32.totalorder %s23, 0
      %p200 = por %p198, %p199
      %p201 = scmp.ne.s32.totalorder %s193, %s195
      %p202 = scmp.eq.s32.totalorder %s28, 3
      %p203 = por %p201, %p202
      %p204 = scmp.ne.s32.totalorder %s195, %s196
      %p205 = scmp.eq.s32.totalorder %s28, 0
      %p206 = por %p204, %p205
      %p207 = scmp.ne.s32.totalorder %s195, %s196
      %p208 = scmp.eq.s32.totalorder %s29, 3
      %p209 = por %p207, %p208
      %p211 = scmp.ne.s32.totalorder %s196, %s210
      %p212 = scmp.eq.s32.totalorder %s29, 0
      %p213 = por %p211, %p212
      %s215 = sadd.s32 %s214, 1
      %p218 = scmp.eq.s32.totalorder %s23, 3
      %p219 = scmp.ne.s32.totalorder %s214, %s216
      %p220 = scmp.eq.s32.totalorder %s23, 0
      %p221 = por %p219, %p220
      %p222 = scmp.ne.s32.totalorder %s214, %s216
      %p223 = scmp.eq.s32.totalorder %s28, 3
      %p224 = por %p222, %p223
      %p225 = scmp.ne.s32.totalorder %s216, %s217
      %p226 = scmp.eq.s32.totalorder %s28, 0
      %p227 = por %p225, %p226
      %p228 = scmp.ne.s32.totalorder %s216, %s217
      %p229 = scmp.eq.s32.totalorder %s29, 3
      %p230 = por %p228, %p229
      %p232 = scmp.ne.s32.totalorder %s217, %s231
      %p233 = scmp.eq.s32.totalorder %s29, 0
      %p234 = por %p232, %p233
      %s235 = ssub.s32 %s23, %s30
      %p236 = scmp.eq.s32.totalorder %s235, 0
      %s238 = sadd.s32 %s237, 1
      %s239 = scalar_select %p236, %s237, %s238
      %p242 = pneg %p236
      %p243 = scmp.eq.s32.totalorder %s23, 3
      %p244 = por %p242, %p243
      %p245 = scmp.ne.s32.totalorder %s237, %s240
      %p246 = scmp.eq.s32.totalorder %s23, 0
      %p247 = por %p245, %p246
      %p248 = scmp.ne.s32.totalorder %s237, %s240
      %p249 = scmp.eq.s32.totalorder %s28, 3
      %p250 = por %p248, %p249
      %p251 = scmp.ne.s32.totalorder %s240, %s241
      %p252 = scmp.eq.s32.totalorder %s28, 0
      %p253 = por %p251, %p252
      %p254 = scmp.ne.s32.totalorder %s240, %s241
      %p255 = scmp.eq.s32.totalorder %s29, 3
      %p256 = por %p254, %p255
      %p258 = scmp.ne.s32.totalorder %s241, %s257
      %p259 = scmp.eq.s32.totalorder %s29, 0
      %p260 = por %p258, %p259
      %p261 = scmp.le.s32.totalorder 1, %s23
      %p262 = scmp.lt.s32.totalorder %s23, 5
      %p263 = pnand %p261, %p262
      %p264 = pneg %p263
      // Predicated region
      $region9: #{tpu_custom_call.1} parent=5 // pred_check
        _
      $region10: #{tpu_custom_call.1} parent=5 // pred_check_branch
        %266 = sbr.rel (%p263) target = $region12
      $region11: #{tpu_custom_call.1} parent=5 // pred_region
        %s267 = ssub.s32 %s23, 1
        // Predicated region
        $region13: #{tpu_custom_call.1} parent=11 // pred_check
          %p268 = pneg %p70
        $region14: #{tpu_custom_call.1} parent=11 // pred_check_branch
          %270 = sbr.rel (%p268) target = $region16
        $region15: #{tpu_custom_call.1} parent=11 // pred_region
          _
        $region16: #{tpu_custom_call.1} parent=11 // pred_fallthru
          _
        // Predicated region
        $region17: #{tpu_custom_call.1} parent=11 // pred_check
          %p271 = pneg %p91
        $region18: #{tpu_custom_call.1} parent=11 // pred_check_branch
          %273 = sbr.rel (%p271) target = $region20
        $region19: #{tpu_custom_call.1} parent=11 // pred_region
          _
        $region20: #{tpu_custom_call.1} parent=11 // pred_fallthru
          _
        // Predicated region
        $region21: #{tpu_custom_call.1} parent=11 // pred_check
          %p274 = pneg %p112
        $region22: #{tpu_custom_call.1} parent=11 // pred_check_branch
          %276 = sbr.rel (%p274) target = $region24
        $region23: #{tpu_custom_call.1} parent=11 // pred_region
          %s278 = ssub.s32 3072, 3072
          %279 = vsyncadd [#allocation8], %s278
          %s280 = sshll.u32 [#allocation7], 4
          %s281 = int_to_ptr.vmem [resolvable:$true] %s280
          %286 = dma.hbm_to_vmem [thread:$0]  %s3, 3072, %s281, [#allocation8], 128, 128, 8
        $region24: #{tpu_custom_call.1} parent=11 // pred_fallthru
          _
        // Predicated region
        $region25: #{tpu_custom_call.1} parent=11 // pred_check
          %p287 = pneg %p185
        $region26: #{tpu_custom_call.1} parent=11 // pred_check_branch
          %289 = sbr.rel (%p287) target = $region28
        $region27: #{tpu_custom_call.1} parent=11 // pred_region
          %s291 = ssub.s32 6144, 6144
          %292 = vsyncadd [#allocation8], %s291
          %s293 = sshll.u32 [#allocation11], 4
          %s294 = int_to_ptr.vmem [resolvable:$true] %s293
          %299 = dma.hbm_to_vmem [thread:$0]  %s6, 6144, %s294, [#allocation8], 128, 128, 8
        $region28: #{tpu_custom_call.1} parent=11 // pred_fallthru
          _
        // Predicated region
        $region29: #{tpu_custom_call.1} parent=11 // pred_check
          %p300 = pneg %p206
        $region30: #{tpu_custom_call.1} parent=11 // pred_check_branch
          %302 = sbr.rel (%p300) target = $region32
        $region31: #{tpu_custom_call.1} parent=11 // pred_region
          _
        $region32: #{tpu_custom_call.1} parent=11 // pred_fallthru
          _
        // Predicated region
        $region33: #{tpu_custom_call.1} parent=11 // pred_check
          %p303 = pneg %p227
        $region34: #{tpu_custom_call.1} parent=11 // pred_check_branch
          %305 = sbr.rel (%p303) target = $region36
        $region35: #{tpu_custom_call.1} parent=11 // pred_region
          %s307 = ssub.s32 1024, 1024
          %308 = vsyncadd [#allocation13], %s307
          %s309 = sshll.u32 [#allocation12], 4
          %s310 = int_to_ptr.vmem [resolvable:$true] %s309
          %315 = dma.hbm_to_vmem [thread:$0]  %s8, 1024, %s310, [#allocation13], 128, 128, 8
        $region36: #{tpu_custom_call.1} parent=11 // pred_fallthru
          _
      $region12: #{tpu_custom_call.1} parent=5 // pred_fallthru
        _
      %p316 = scmp.lt.s32.totalorder %s23, 4
      // Predicated region
      $region37: #{tpu_custom_call.1} parent=5 // pred_check
        %p317 = pneg %p316
      $region38: #{tpu_custom_call.1} parent=5 // pred_check_branch
        %319 = sbr.rel (%p317) target = $region40
      $region39: #{tpu_custom_call.1} parent=5 // pred_region
        // Predicated region
        $region41: #{tpu_custom_call.1} parent=39 // pred_check
          %p320 = pneg %p43
        $region42: #{tpu_custom_call.1} parent=39 // pred_check_branch
          %322 = sbr.rel (%p320) target = $region44
        $region43: #{tpu_custom_call.1} parent=39 // pred_region
          %s323 = sand.u32 %s23, 1
          %s324 = scalar_lea.sflag [#allocation5], %s323
          %s325 = sand.u32 %s33, 1
          %s326 = smul.addr %s325, 64
          %s327 = scalar_lea.vmem [#allocation4], %s326
          %s329 = ssub.s32 1024, 1024
          %330 = vsyncadd %s324, %s329
          %s331 = smul.addr %s23, 8
          %s332 = smul.addr %s331, 128
          %s333 = scalar_lea.hbm %s0, %s332
          %s334 = sshll.u32 %s327, 4
          %s335 = int_to_ptr.vmem [resolvable:$true] %s334
          %340 = dma.hbm_to_vmem [thread:$0]  %s333, 1024, %s335, %s324, 128, 128, 8
        $region44: #{tpu_custom_call.1} parent=39 // pred_fallthru
          _
        // Predicated region
        $region45: #{tpu_custom_call.1} parent=39 // pred_check
          %p341 = pneg %p132
        $region46: #{tpu_custom_call.1} parent=39 // pred_check_branch
          %343 = sbr.rel (%p341) target = $region48
        $region47: #{tpu_custom_call.1} parent=39 // pred_region
          %s344 = sand.u32 %s23, 1
          %s345 = scalar_lea.sflag [#allocation5], %s344
          %s346 = sand.u32 %s122, 1
          %s347 = smul.addr %s346, 4
          %s348 = scalar_lea.vmem [#allocation9], %s347
          %s349 = smul.u32 4, %s23
          %s351 = ssub.s32 64, 64
          %352 = vsyncadd %s345, %s351
          %s353 = smul.addr %s349, 16
          %s354 = scalar_lea.hbm %s4, %s353
          %s355 = sshll.u32 %s348, 4
          %s356 = int_to_ptr.vmem [resolvable:$true] %s355
          %361 = dma.hbm_to_vmem [thread:$0]  %s354, 64, %s356, %s345, 16, 16, 1
        $region48: #{tpu_custom_call.1} parent=39 // pred_fallthru
          _
        // Predicated region
        $region49: #{tpu_custom_call.1} parent=39 // pred_check
          %p362 = pneg %p158
        $region50: #{tpu_custom_call.1} parent=39 // pred_check_branch
          %364 = sbr.rel (%p362) target = $region52
        $region51: #{tpu_custom_call.1} parent=39 // pred_region
          %s365 = sand.u32 %s23, 1
          %s366 = scalar_lea.sflag [#allocation5], %s365
          %s367 = sand.u32 %s148, 1
          %s368 = smul.addr %s367, 4
          %s369 = scalar_lea.vmem [#allocation10], %s368
          %s370 = smul.u32 4, %s23
          %s372 = ssub.s32 64, 64
          %373 = vsyncadd %s366, %s372
          %s374 = smul.addr %s370, 16
          %s375 = scalar_lea.hbm %s5, %s374
          %s376 = sshll.u32 %s369, 4
          %s377 = int_to_ptr.vmem [resolvable:$true] %s376
          %382 = dma.hbm_to_vmem [thread:$0]  %s375, 64, %s377, %s366, 16, 16, 1
        $region52: #{tpu_custom_call.1} parent=39 // pred_fallthru
          _
      $region40: #{tpu_custom_call.1} parent=5 // pred_fallthru
        _
      %p383 = scmp.le.s32.totalorder 1, %s23
      %p384 = scmp.lt.s32.totalorder %s23, 5
      %p385 = pnand %p383, %p384
      %p386 = pneg %p385
      // Predicated region
      $region53: #{tpu_custom_call.1} parent=5 // pred_check
        _
      $region54: #{tpu_custom_call.1} parent=5 // pred_check_branch
        %388 = sbr.rel (%p385) target = $region56
      $region55: #{tpu_custom_call.1} parent=5 // pred_region
        %s389 = ssub.s32 %s23, 1
        %s390 = sand.u32 %s28, 1
        %s391 = scalar_lea.sflag [#allocation5], %s390
        %s392 = sand.u32 %s36, 1
        %s393 = smul.addr %s392, 64
        %s394 = scalar_lea.vmem [#allocation4], %s393
        // Predicated region
        $region57: #{tpu_custom_call.1} parent=55 // pred_check
          %p395 = pneg %p49
        $region58: #{tpu_custom_call.1} parent=55 // pred_check_branch
          %397 = sbr.rel (%p395) target = $region60
        $region59: #{tpu_custom_call.1} parent=55 // pred_region
          %398 = dma.done %s391, 1024
        $region60: #{tpu_custom_call.1} parent=55 // pred_fallthru
          _
        // Predicated region
        $region61: #{tpu_custom_call.1} parent=55 // pred_check
          %p399 = pneg %p112
        $region62: #{tpu_custom_call.1} parent=55 // pred_check_branch
          %401 = sbr.rel (%p399) target = $region64
        $region63: #{tpu_custom_call.1} parent=55 // pred_region
          %402 = dma.done [#allocation8], 3072
        $region64: #{tpu_custom_call.1} parent=55 // pred_fallthru
          _
        %s403 = sand.u32 %s28, 1
        %s404 = scalar_lea.sflag [#allocation5], %s403
        %s405 = sand.u32 %s125, 1
        %s406 = smul.addr %s405, 4
        %s407 = scalar_lea.vmem [#allocation9], %s406
        // Predicated region
        $region65: #{tpu_custom_call.1} parent=55 // pred_check
          %p408 = pneg %p138
        $region66: #{tpu_custom_call.1} parent=55 // pred_check_branch
          %410 = sbr.rel (%p408) target = $region68
        $region67: #{tpu_custom_call.1} parent=55 // pred_region
          %411 = dma.done %s404, 64
        $region68: #{tpu_custom_call.1} parent=55 // pred_fallthru
          _
        %s412 = sand.u32 %s28, 1
        %s413 = scalar_lea.sflag [#allocation5], %s412
        %s414 = sand.u32 %s151, 1
        %s415 = smul.addr %s414, 4
        %s416 = scalar_lea.vmem [#allocation10], %s415
        // Predicated region
        $region69: #{tpu_custom_call.1} parent=55 // pred_check
          %p417 = pneg %p164
        $region70: #{tpu_custom_call.1} parent=55 // pred_check_branch
          %419 = sbr.rel (%p417) target = $region72
        $region71: #{tpu_custom_call.1} parent=55 // pred_region
          %420 = dma.done %s413, 64
        $region72: #{tpu_custom_call.1} parent=55 // pred_fallthru
          _
        // Predicated region
        $region73: #{tpu_custom_call.1} parent=55 // pred_check
          %p421 = pneg %p185
        $region74: #{tpu_custom_call.1} parent=55 // pred_check_branch
          %423 = sbr.rel (%p421) target = $region76
        $region75: #{tpu_custom_call.1} parent=55 // pred_region
          %424 = dma.done [#allocation8], 6144
        $region76: #{tpu_custom_call.1} parent=55 // pred_fallthru
          _
        // Predicated region
        $region77: #{tpu_custom_call.1} parent=55 // pred_check
          %p425 = pneg %p227
        $region78: #{tpu_custom_call.1} parent=55 // pred_check_branch
          %427 = sbr.rel (%p425) target = $region80
        $region79: #{tpu_custom_call.1} parent=55 // pred_region
          %428 = dma.done [#allocation13], 1024
        $region80: #{tpu_custom_call.1} parent=55 // pred_fallthru
          _
        %s429 = sand.u32 %s28, 1
        %s430 = scalar_lea.sflag [#allocation5], %s429
        %s431 = sand.u32 %s36, 1
        %s432 = smul.addr %s431, 64
        %s433 = scalar_lea.vmem [#allocation4], %s432
        %p434 = pneg %p49
        %p435 = pneg %p46
        %p436 = pneg %p70
        %p437 = pneg %p67
        %p438 = pneg %p91
        %p439 = pneg %p88
        %p440 = pneg %p112
        %p441 = pneg %p109
        %s442 = sand.u32 %s28, 1
        %s443 = scalar_lea.sflag [#allocation5], %s442
        %s444 = sand.u32 %s125, 1
        %s445 = smul.addr %s444, 4
        %s446 = scalar_lea.vmem [#allocation9], %s445
        %p447 = pneg %p138
        %p448 = pneg %p135
        %s449 = sand.u32 %s28, 1
        %s450 = scalar_lea.sflag [#allocation5], %s449
        %s451 = sand.u32 %s151, 1
        %s452 = smul.addr %s451, 4
        %s453 = scalar_lea.vmem [#allocation10], %s452
        %p454 = pneg %p164
        %p455 = pneg %p161
        %p456 = pneg %p185
        %p457 = pneg %p182
        %p458 = pneg %p206
        %p459 = pneg %p203
        %p460 = pneg %p227
        %p461 = pneg %p224
        %p462 = pneg %p253
        %p463 = pneg %p250
        %s464 = sand.u32 %s240, 1
        %s465 = scalar_lea.sflag [#allocation6], %s464
        %s466 = sand.u32 %s240, 1
        %s467 = smul.addr %s466, 64
        %s468 = scalar_lea.vmem [#allocation14], %s467
        %s469 = smul.u32 4, %s28
        %s470 = smul.u32 4, %s28
        %v471 = vld [vmem:[%s394] sm:$0xff]
        %v472 = vld [vmem:[%s394 + $0x8] sm:$0xff]
        %v473 = vld [vmem:[%s394 + $0x10] sm:$0xff]
        %v474 = vld [vmem:[%s394 + $0x18] sm:$0xff]
        %v475 = vld [vmem:[%s394 + $0x20] sm:$0xff]
        %v476 = vld [vmem:[%s394 + $0x28] sm:$0xff]
        %v477 = vld [vmem:[%s394 + $0x30] sm:$0xff]
        %v478 = vld [vmem:[%s394 + $0x38] sm:$0xff]
        %v479 = vld [vmem:[%s1] sm:$0x1]
        %v481 = vlaneseq
        %v482 = vshrl.u32 %v481, 7
        %v483 = vsub.s32 0, %v482
        %v484 = vrot.slane %v479, %v483
        %v486 = vmul.f32 %v471, %v484
        %v487 = vmul.f32 %v472, %v484
        %v488 = vmul.f32 %v473, %v484
        %v489 = vmul.f32 %v474, %v484
        %v490 = vmul.f32 %v475, %v484
        %v491 = vmul.f32 %v476, %v484
        %v492 = vmul.f32 %v477, %v484
        %v493 = vmul.f32 %v478, %v484
        %v494 = vld [vmem:[%s2] sm:$0x1]
        %v496 = vlaneseq
        %v497 = vshrl.u32 %v496, 7
        %v498 = vsub.s32 0, %v497
        %v499 = vrot.slane %v494, %v498
        %v501 = vadd.f32 %v486, %v499
        %v502 = vadd.f32 %v487, %v499
        %v503 = vadd.f32 %v488, %v499
        %v504 = vadd.f32 %v489, %v499
        %v505 = vadd.f32 %v490, %v499
        %v506 = vadd.f32 %v491, %v499
        %v507 = vadd.f32 %v492, %v499
        %v508 = vadd.f32 %v493, %v499
        %v509 = vmax.f32 %v501, 0.0
        %v510 = vmax.f32 %v502, 0.0
        %v511 = vmax.f32 %v503, 0.0
        %v512 = vmax.f32 %v504, 0.0
        %v513 = vmax.f32 %v505, 0.0
        %v514 = vmax.f32 %v506, 0.0
        %v515 = vmax.f32 %v507, 0.0
        %v516 = vmax.f32 %v508, 0.0
        %vm517 = vcmask 516096
        %518 = vst.msk [vmem:[#allocation2] sm:$0x1] %vm517, 0.0
        %vm519 = vcmask 523264
        %520 = vst.msk [vmem:[#allocation2 + $0x1] sm:$0xff] %vm519, %v509
        %521 = vst.msk [vmem:[#allocation2 + $0x9] sm:$0xff] %vm519, %v510
        %522 = vst.msk [vmem:[#allocation2 + $0x11] sm:$0x1] %vm517, 0.0
        %523 = vst.msk [vmem:[#allocation2 + $0x12] sm:$0x1] %vm517, 0.0
        %524 = vst.msk [vmem:[#allocation2 + $0x13] sm:$0xff] %vm519, %v511
        %525 = vst.msk [vmem:[#allocation2 + $0x1b] sm:$0xff] %vm519, %v512
        %526 = vst.msk [vmem:[#allocation2 + $0x23] sm:$0x1] %vm517, 0.0
        %527 = vst.msk [vmem:[#allocation2 + $0x24] sm:$0x1] %vm517, 0.0
        %528 = vst.msk [vmem:[#allocation2 + $0x25] sm:$0xff] %vm519, %v513
        %529 = vst.msk [vmem:[#allocation2 + $0x2d] sm:$0xff] %vm519, %v514
        %530 = vst.msk [vmem:[#allocation2 + $0x35] sm:$0x1] %vm517, 0.0
        %531 = vst.msk [vmem:[#allocation2 + $0x36] sm:$0x1] %vm517, 0.0
        %532 = vst.msk [vmem:[#allocation2 + $0x37] sm:$0xff] %vm519, %v515
        %533 = vst.msk [vmem:[#allocation2 + $0x3f] sm:$0xff] %vm519, %v516
        %534 = vst.msk [vmem:[#allocation2 + $0x47] sm:$0x1] %vm517, 0.0
        %v535 = vld [vmem:[#allocation2] sm:$0xff]
        %v536 = vld [vmem:[#allocation2 + $0x8] sm:$0xff]
        %v537 = vld [vmem:[#allocation2 + $0x10] sm:$0xff]
        %v538 = vld [vmem:[#allocation2 + $0x18] sm:$0xff]
        %v539 = vld [vmem:[#allocation2 + $0x20] sm:$0xff]
        %v540 = vld [vmem:[#allocation2 + $0x28] sm:$0xff]
        %v541 = vld [vmem:[#allocation2 + $0x30] sm:$0xff]
        %v542 = vld [vmem:[#allocation2 + $0x38] sm:$0xff]
        %v543 = vld [vmem:[#allocation2 + $0x40] sm:$0x3f]
        %v544 = vld [vmem:[#allocation7] sm:$0xff]
        %v545 = vld [vmem:[#allocation7 + $0x8] sm:$0xff]
        %v546 = vld [vmem:[#allocation7 + $0x10] sm:$0xff]
        %v547 = vld [vmem:[#allocation7 + $0x18] sm:$0xff]
        %v548 = vld [vmem:[#allocation7 + $0x20] sm:$0xff]
        %v549 = vld [vmem:[#allocation7 + $0x28] sm:$0xff]
        %v550 = vld [vmem:[#allocation7 + $0x30] sm:$0xff]
        %v551 = vld [vmem:[#allocation7 + $0x38] sm:$0xff]
        %v552 = vld [vmem:[#allocation2 + $0x1] sm:$0xff]
        %v553 = vld [vmem:[#allocation2 + $0x9] sm:$0xff]
        %v554 = vld [vmem:[#allocation2 + $0x11] sm:$0xff]
        %v555 = vld [vmem:[#allocation2 + $0x19] sm:$0xff]
        %v556 = vld [vmem:[#allocation2 + $0x21] sm:$0xff]
        %v557 = vld [vmem:[#allocation2 + $0x29] sm:$0xff]
        %v558 = vld [vmem:[#allocation2 + $0x31] sm:$0xff]
        %v559 = vld [vmem:[#allocation2 + $0x39] sm:$0xff]
        %v560 = vld [vmem:[#allocation2 + $0x41] sm:$0x3f]
        %s561 = scalar_lea.vmem [#allocation7], 64
        %v562 = vld [vmem:[%s561] sm:$0xff]
        %v563 = vld [vmem:[%s561 + $0x8] sm:$0xff]
        %v564 = vld [vmem:[%s561 + $0x10] sm:$0xff]
        %v565 = vld [vmem:[%s561 + $0x18] sm:$0xff]
        %v566 = vld [vmem:[%s561 + $0x20] sm:$0xff]
        %v567 = vld [vmem:[%s561 + $0x28] sm:$0xff]
        %v568 = vld [vmem:[%s561 + $0x30] sm:$0xff]
        %v569 = vld [vmem:[%s561 + $0x38] sm:$0xff]
        %v571 = vsel %vm519, %v552, 0
        %v574 = vsel %vm519, %v553, 0
        %v577 = vsel %vm519, %v554, 0
        %v580 = vsel %vm519, %v555, 0
        %v583 = vsel %vm519, %v556, 0
        %v586 = vsel %vm519, %v557, 0
        %v589 = vsel %vm519, %v558, 0
        %v592 = vsel %vm519, %v559, 0
        %v595 = vsel %vm519, %v560, 0
        %597 = vmatprep.subr.mxu0 0.0
        %598 = vmatpush1.msra.mxu0 0.0
        %599 = vmatprep.subr.mxu0 0.0
        %600 = vmatpush1.msra.mxu0 0.0
        %601 = vmatprep.subr.mxu0 0.0
        %602 = vmatpush1.msra.mxu0 0.0
        %603 = vmatprep.subr.mxu0 0.0
        %604 = vmatpush1.msra.mxu0 0.0
        %605 = vmatprep.subr.mxu0 0.0
        %606 = vmatpush1.msra.mxu0 0.0
        %607 = vmatprep.subr.mxu0 0.0
        %608 = vmatpush1.msra.mxu0 0.0
        %609 = vmatprep.subr.mxu0 0.0
        %610 = vmatpush1.msra.mxu0 0.0
        %611 = vmatprep.subr.mxu0 0.0
        %612 = vmatpush1.msra.mxu0 0.0
        %613 = vmatprep.subr.mxu0 0.0
        %614 = vmatpush1.msra.mxu0 %v569
        %615 = vmatprep.subr.mxu0 0.0
        %616 = vmatpush1.msra.mxu0 %v568
        %617 = vmatprep.subr.mxu0 0.0
        %618 = vmatpush1.msra.mxu0 %v567
        %619 = vmatprep.subr.mxu0 0.0
        %620 = vmatpush1.msra.mxu0 %v566
        %621 = vmatprep.subr.mxu0 0.0
        %622 = vmatpush1.msra.mxu0 %v565
        %623 = vmatprep.subr.mxu0 0.0
        %624 = vmatpush1.msra.mxu0 %v564
        %625 = vmatprep.subr.mxu0 0.0
        %626 = vmatpush1.msra.mxu0 %v563
        %627 = vmatprep.subr.mxu0 0.0
        %628 = vmatpush1.msra.mxu0 %v562
        %629 = vmatprep.subr.mxu0 0.0
        %630 = vmatpush2.msra.mxu0 0.0
        %631 = vmatprep.subr.mxu0 0.0
        %632 = vmatpush2.msra.mxu0 0.0
        %633 = vmatprep.subr.mxu0 0.0
        %634 = vmatpush2.msra.mxu0 0.0
        %635 = vmatprep.subr.mxu0 0.0
        %636 = vmatpush2.msra.mxu0 0.0
        %637 = vmatprep.subr.mxu0 0.0
        %638 = vmatpush2.msra.mxu0 0.0
        %639 = vmatprep.subr.mxu0 0.0
        %640 = vmatpush2.msra.mxu0 0.0
        %641 = vmatprep.subr.mxu0 0.0
        %642 = vmatpush2.msra.mxu0 0.0
        %643 = vmatprep.subr.mxu0 0.0
        %644 = vmatpush2.msra.mxu0 0.0
        %645 = vmatprep.subr.mxu0 0.0
        %646 = vmatpush2.msra.mxu0 0.0
        %647 = vmatprep.subr.mxu0 0.0
        %648 = vmatpush2.msra.mxu0 0.0
        %649 = vmatprep.subr.mxu0 0.0
        %650 = vmatpush2.msra.mxu0 0.0
        %651 = vmatprep.subr.mxu0 0.0
        %652 = vmatpush2.msra.mxu0 0.0
        %653 = vmatprep.subr.mxu0 0.0
        %654 = vmatpush2.msra.mxu0 0.0
        %655 = vmatprep.subr.mxu0 0.0
        %656 = vmatpush2.msra.mxu0 0.0
        %657 = vmatprep.subr.mxu0 0.0
        %658 = vmatpush2.msra.mxu0 0.0
        %659 = vmatprep.subr.mxu0 0.0
        %660 = vmatpush2.msra.mxu0 0.0
        %661 = vmatprep.mubr.f32.mxu0 0.0
        %662 = vmatmul.mubr.f32.gmra.mxu0 %v571
        %v663 = vpop.f32.mrf.mxu0
        %v664 = vadd.f32 0.0, %v663
        %v665 = vpop.f32.mrf.mxu0
        %666 = vmatprep.mubr.f32.mxu0 0.0
        %667 = vmatmul.mubr.f32.gmra.mxu0 %v574
        %v668 = vpop.f32.mrf.mxu0
        %v669 = vadd.f32 0.0, %v668
        %v670 = vpop.f32.mrf.mxu0
        %671 = vmatprep.mubr.f32.mxu0 0.0
        %672 = vmatmul.mubr.f32.gmra.mxu0 %v577
        %v673 = vpop.f32.mrf.mxu0
        %v674 = vadd.f32 0.0, %v673
        %v675 = vpop.f32.mrf.mxu0
        %676 = vmatprep.mubr.f32.mxu0 0.0
        %677 = vmatmul.mubr.f32.gmra.mxu0 %v580
        %v678 = vpop.f32.mrf.mxu0
        %v679 = vadd.f32 0.0, %v678
        %v680 = vpop.f32.mrf.mxu0
        %681 = vmatprep.mubr.f32.mxu0 0.0
        %682 = vmatmul.mubr.f32.gmra.mxu0 %v583
        %v683 = vpop.f32.mrf.mxu0
        %v684 = vadd.f32 0.0, %v683
        %v685 = vpop.f32.mrf.mxu0
        %686 = vmatprep.mubr.f32.mxu0 0.0
        %687 = vmatmul.mubr.f32.gmra.mxu0 %v586
        %v688 = vpop.f32.mrf.mxu0
        %v689 = vadd.f32 0.0, %v688
        %v690 = vpop.f32.mrf.mxu0
        %691 = vmatprep.mubr.f32.mxu0 0.0
        %692 = vmatmul.mubr.f32.gmra.mxu0 %v589
        %v693 = vpop.f32.mrf.mxu0
        %v694 = vadd.f32 0.0, %v693
        %v695 = vpop.f32.mrf.mxu0
        %696 = vmatprep.mubr.f32.mxu0 0.0
        %697 = vmatmul.mubr.f32.gmra.mxu0 %v592
        %v698 = vpop.f32.mrf.mxu0
        %v699 = vadd.f32 0.0, %v698
        %v700 = vpop.f32.mrf.mxu0
        %701 = vmatprep.mubr.f32.mxu0 0.0
        %702 = vmatmul.mubr.f32.gmra.mxu0 %v595
        %v703 = vpop.f32.mrf.mxu0
        %v704 = vadd.f32 0.0, %v703
        %v705 = vpop.f32.mrf.mxu0
        %706 = vdwg.mxu0
        %v708 = vsel %vm519, %v535, 0
        %v711 = vsel %vm519, %v536, 0
        %v714 = vsel %vm519, %v537, 0
        %v717 = vsel %vm519, %v538, 0
        %v720 = vsel %vm519, %v539, 0
        %v723 = vsel %vm519, %v540, 0
        %v726 = vsel %vm519, %v541, 0
        %v729 = vsel %vm519, %v542, 0
        %v732 = vsel %vm519, %v543, 0
        %734 = vmatprep.subr.mxu0 0.0
        %735 = vmatpush1.msra.mxu0 0.0
        %736 = vmatprep.subr.mxu0 0.0
        %737 = vmatpush1.msra.mxu0 0.0
        %738 = vmatprep.subr.mxu0 0.0
        %739 = vmatpush1.msra.mxu0 0.0
        %740 = vmatprep.subr.mxu0 0.0
        %741 = vmatpush1.msra.mxu0 0.0
        %742 = vmatprep.subr.mxu0 0.0
        %743 = vmatpush1.msra.mxu0 0.0
        %744 = vmatprep.subr.mxu0 0.0
        %745 = vmatpush1.msra.mxu0 0.0
        %746 = vmatprep.subr.mxu0 0.0
        %747 = vmatpush1.msra.mxu0 0.0
        %748 = vmatprep.subr.mxu0 0.0
        %749 = vmatpush1.msra.mxu0 0.0
        %750 = vmatprep.subr.mxu0 0.0
        %751 = vmatpush1.msra.mxu0 %v551
        %752 = vmatprep.subr.mxu0 0.0
        %753 = vmatpush1.msra.mxu0 %v550
        %754 = vmatprep.subr.mxu0 0.0
        %755 = vmatpush1.msra.mxu0 %v549
        %756 = vmatprep.subr.mxu0 0.0
        %757 = vmatpush1.msra.mxu0 %v548
        %758 = vmatprep.subr.mxu0 0.0
        %759 = vmatpush1.msra.mxu0 %v547
        %760 = vmatprep.subr.mxu0 0.0
        %761 = vmatpush1.msra.mxu0 %v546
        %762 = vmatprep.subr.mxu0 0.0
        %763 = vmatpush1.msra.mxu0 %v545
        %764 = vmatprep.subr.mxu0 0.0
        %765 = vmatpush1.msra.mxu0 %v544
        %766 = vmatprep.subr.mxu0 0.0
        %767 = vmatpush2.msra.mxu0 0.0
        %768 = vmatprep.subr.mxu0 0.0
        %769 = vmatpush2.msra.mxu0 0.0
        %770 = vmatprep.subr.mxu0 0.0
        %771 = vmatpush2.msra.mxu0 0.0
        %772 = vmatprep.subr.mxu0 0.0
        %773 = vmatpush2.msra.mxu0 0.0
        %774 = vmatprep.subr.mxu0 0.0
        %775 = vmatpush2.msra.mxu0 0.0
        %776 = vmatprep.subr.mxu0 0.0
        %777 = vmatpush2.msra.mxu0 0.0
        %778 = vmatprep.subr.mxu0 0.0
        %779 = vmatpush2.msra.mxu0 0.0
        %780 = vmatprep.subr.mxu0 0.0
        %781 = vmatpush2.msra.mxu0 0.0
        %782 = vmatprep.subr.mxu0 0.0
        %783 = vmatpush2.msra.mxu0 0.0
        %784 = vmatprep.subr.mxu0 0.0
        %785 = vmatpush2.msra.mxu0 0.0
        %786 = vmatprep.subr.mxu0 0.0
        %787 = vmatpush2.msra.mxu0 0.0
        %788 = vmatprep.subr.mxu0 0.0
        %789 = vmatpush2.msra.mxu0 0.0
        %790 = vmatprep.subr.mxu0 0.0
        %791 = vmatpush2.msra.mxu0 0.0
        %792 = vmatprep.subr.mxu0 0.0
        %793 = vmatpush2.msra.mxu0 0.0
        %794 = vmatprep.subr.mxu0 0.0
        %795 = vmatpush2.msra.mxu0 0.0
        %796 = vmatprep.subr.mxu0 0.0
        %797 = vmatpush2.msra.mxu0 0.0
        %798 = vmatprep.mubr.f32.mxu0 0.0
        %799 = vmatmul.mubr.f32.gmra.mxu0 %v708
        %v800 = vpop.f32.mrf.mxu0
        %v801 = vadd.f32 %v664, %v800
        %v802 = vpop.f32.mrf.mxu0
        %803 = vmatprep.mubr.f32.mxu0 0.0
        %804 = vmatmul.mubr.f32.gmra.mxu0 %v711
        %v805 = vpop.f32.mrf.mxu0
        %v806 = vadd.f32 %v669, %v805
        %v807 = vpop.f32.mrf.mxu0
        %808 = vmatprep.mubr.f32.mxu0 0.0
        %809 = vmatmul.mubr.f32.gmra.mxu0 %v714
        %v810 = vpop.f32.mrf.mxu0
        %v811 = vadd.f32 %v674, %v810
        %v812 = vpop.f32.mrf.mxu0
        %813 = vmatprep.mubr.f32.mxu0 0.0
        %814 = vmatmul.mubr.f32.gmra.mxu0 %v717
        %v815 = vpop.f32.mrf.mxu0
        %v816 = vadd.f32 %v679, %v815
        %v817 = vpop.f32.mrf.mxu0
        %818 = vmatprep.mubr.f32.mxu0 0.0
        %819 = vmatmul.mubr.f32.gmra.mxu0 %v720
        %v820 = vpop.f32.mrf.mxu0
        %v821 = vadd.f32 %v684, %v820
        %v822 = vpop.f32.mrf.mxu0
        %823 = vmatprep.mubr.f32.mxu0 0.0
        %824 = vmatmul.mubr.f32.gmra.mxu0 %v723
        %v825 = vpop.f32.mrf.mxu0
        %v826 = vadd.f32 %v689, %v825
        %v827 = vpop.f32.mrf.mxu0
        %828 = vmatprep.mubr.f32.mxu0 0.0
        %829 = vmatmul.mubr.f32.gmra.mxu0 %v726
        %v830 = vpop.f32.mrf.mxu0
        %v831 = vadd.f32 %v694, %v830
        %v832 = vpop.f32.mrf.mxu0
        %833 = vmatprep.mubr.f32.mxu0 0.0
        %834 = vmatmul.mubr.f32.gmra.mxu0 %v729
        %v835 = vpop.f32.mrf.mxu0
        %v836 = vadd.f32 %v699, %v835
        %v837 = vpop.f32.mrf.mxu0
        %838 = vmatprep.mubr.f32.mxu0 0.0
        %839 = vmatmul.mubr.f32.gmra.mxu0 %v732
        %v840 = vpop.f32.mrf.mxu0
        %v841 = vadd.f32 %v704, %v840
        %v842 = vpop.f32.mrf.mxu0
        %843 = vdwg.mxu0
        %v844 = vld [vmem:[#allocation2 + $0x2] sm:$0xff]
        %v845 = vld [vmem:[#allocation2 + $0xa] sm:$0xff]
        %v846 = vld [vmem:[#allocation2 + $0x12] sm:$0xff]
        %v847 = vld [vmem:[#allocation2 + $0x1a] sm:$0xff]
        %v848 = vld [vmem:[#allocation2 + $0x22] sm:$0xff]
        %v849 = vld [vmem:[#allocation2 + $0x2a] sm:$0xff]
        %v850 = vld [vmem:[#allocation2 + $0x32] sm:$0xff]
        %v851 = vld [vmem:[#allocation2 + $0x3a] sm:$0xff]
        %v852 = vld [vmem:[#allocation2 + $0x42] sm:$0x3f]
        %s853 = scalar_lea.vmem [#allocation7], 128
        %v854 = vld [vmem:[%s853] sm:$0xff]
        %v855 = vld [vmem:[%s853 + $0x8] sm:$0xff]
        %v856 = vld [vmem:[%s853 + $0x10] sm:$0xff]
        %v857 = vld [vmem:[%s853 + $0x18] sm:$0xff]
        %v858 = vld [vmem:[%s853 + $0x20] sm:$0xff]
        %v859 = vld [vmem:[%s853 + $0x28] sm:$0xff]
        %v860 = vld [vmem:[%s853 + $0x30] sm:$0xff]
        %v861 = vld [vmem:[%s853 + $0x38] sm:$0xff]
        %v863 = vsel %vm519, %v844, 0
        %v866 = vsel %vm519, %v845, 0
        %v869 = vsel %vm519, %v846, 0
        %v872 = vsel %vm519, %v847, 0
        %v875 = vsel %vm519, %v848, 0
        %v878 = vsel %vm519, %v849, 0
        %v881 = vsel %vm519, %v850, 0
        %v884 = vsel %vm519, %v851, 0
        %v887 = vsel %vm519, %v852, 0
        %889 = vmatprep.subr.mxu0 0.0
        %890 = vmatpush1.msra.mxu0 0.0
        %891 = vmatprep.subr.mxu0 0.0
        %892 = vmatpush1.msra.mxu0 0.0
        %893 = vmatprep.subr.mxu0 0.0
        %894 = vmatpush1.msra.mxu0 0.0
        %895 = vmatprep.subr.mxu0 0.0
        %896 = vmatpush1.msra.mxu0 0.0
        %897 = vmatprep.subr.mxu0 0.0
        %898 = vmatpush1.msra.mxu0 0.0
        %899 = vmatprep.subr.mxu0 0.0
        %900 = vmatpush1.msra.mxu0 0.0
        %901 = vmatprep.subr.mxu0 0.0
        %902 = vmatpush1.msra.mxu0 0.0
        %903 = vmatprep.subr.mxu0 0.0
        %904 = vmatpush1.msra.mxu0 0.0
        %905 = vmatprep.subr.mxu0 0.0
        %906 = vmatpush1.msra.mxu0 %v861
        %907 = vmatprep.subr.mxu0 0.0
        %908 = vmatpush1.msra.mxu0 %v860
        %909 = vmatprep.subr.mxu0 0.0
        %910 = vmatpush1.msra.mxu0 %v859
        %911 = vmatprep.subr.mxu0 0.0
        %912 = vmatpush1.msra.mxu0 %v858
        %913 = vmatprep.subr.mxu0 0.0
        %914 = vmatpush1.msra.mxu0 %v857
        %915 = vmatprep.subr.mxu0 0.0
        %916 = vmatpush1.msra.mxu0 %v856
        %917 = vmatprep.subr.mxu0 0.0
        %918 = vmatpush1.msra.mxu0 %v855
        %919 = vmatprep.subr.mxu0 0.0
        %920 = vmatpush1.msra.mxu0 %v854
        %921 = vmatprep.subr.mxu0 0.0
        %922 = vmatpush2.msra.mxu0 0.0
        %923 = vmatprep.subr.mxu0 0.0
        %924 = vmatpush2.msra.mxu0 0.0
        %925 = vmatprep.subr.mxu0 0.0
        %926 = vmatpush2.msra.mxu0 0.0
        %927 = vmatprep.subr.mxu0 0.0
        %928 = vmatpush2.msra.mxu0 0.0
        %929 = vmatprep.subr.mxu0 0.0
        %930 = vmatpush2.msra.mxu0 0.0
        %931 = vmatprep.subr.mxu0 0.0
        %932 = vmatpush2.msra.mxu0 0.0
        %933 = vmatprep.subr.mxu0 0.0
        %934 = vmatpush2.msra.mxu0 0.0
        %935 = vmatprep.subr.mxu0 0.0
        %936 = vmatpush2.msra.mxu0 0.0
        %937 = vmatprep.subr.mxu0 0.0
        %938 = vmatpush2.msra.mxu0 0.0
        %939 = vmatprep.subr.mxu0 0.0
        %940 = vmatpush2.msra.mxu0 0.0
        %941 = vmatprep.subr.mxu0 0.0
        %942 = vmatpush2.msra.mxu0 0.0
        %943 = vmatprep.subr.mxu0 0.0
        %944 = vmatpush2.msra.mxu0 0.0
        %945 = vmatprep.subr.mxu0 0.0
        %946 = vmatpush2.msra.mxu0 0.0
        %947 = vmatprep.subr.mxu0 0.0
        %948 = vmatpush2.msra.mxu0 0.0
        %949 = vmatprep.subr.mxu0 0.0
        %950 = vmatpush2.msra.mxu0 0.0
        %951 = vmatprep.subr.mxu0 0.0
        %952 = vmatpush2.msra.mxu0 0.0
        %953 = vmatprep.mubr.f32.mxu0 0.0
        %954 = vmatmul.mubr.f32.gmra.mxu0 %v863
        %v955 = vpop.f32.mrf.mxu0
        %v956 = vadd.f32 0.0, %v955
        %v957 = vpop.f32.mrf.mxu0
        %958 = vmatprep.mubr.f32.mxu0 0.0
        %959 = vmatmul.mubr.f32.gmra.mxu0 %v866
        %v960 = vpop.f32.mrf.mxu0
        %v961 = vadd.f32 0.0, %v960
        %v962 = vpop.f32.mrf.mxu0
        %963 = vmatprep.mubr.f32.mxu0 0.0
        %964 = vmatmul.mubr.f32.gmra.mxu0 %v869
        %v965 = vpop.f32.mrf.mxu0
        %v966 = vadd.f32 0.0, %v965
        %v967 = vpop.f32.mrf.mxu0
        %968 = vmatprep.mubr.f32.mxu0 0.0
        %969 = vmatmul.mubr.f32.gmra.mxu0 %v872
        %v970 = vpop.f32.mrf.mxu0
        %v971 = vadd.f32 0.0, %v970
        %v972 = vpop.f32.mrf.mxu0
        %973 = vmatprep.mubr.f32.mxu0 0.0
        %974 = vmatmul.mubr.f32.gmra.mxu0 %v875
        %v975 = vpop.f32.mrf.mxu0
        %v976 = vadd.f32 0.0, %v975
        %v977 = vpop.f32.mrf.mxu0
        %978 = vmatprep.mubr.f32.mxu0 0.0
        %979 = vmatmul.mubr.f32.gmra.mxu0 %v878
        %v980 = vpop.f32.mrf.mxu0
        %v981 = vadd.f32 0.0, %v980
        %v982 = vpop.f32.mrf.mxu0
        %983 = vmatprep.mubr.f32.mxu0 0.0
        %984 = vmatmul.mubr.f32.gmra.mxu0 %v881
        %v985 = vpop.f32.mrf.mxu0
        %v986 = vadd.f32 0.0, %v985
        %v987 = vpop.f32.mrf.mxu0
        %988 = vmatprep.mubr.f32.mxu0 0.0
        %989 = vmatmul.mubr.f32.gmra.mxu0 %v884
        %v990 = vpop.f32.mrf.mxu0
        %v991 = vadd.f32 0.0, %v990
        %v992 = vpop.f32.mrf.mxu0
        %993 = vmatprep.mubr.f32.mxu0 0.0
        %994 = vmatmul.mubr.f32.gmra.mxu0 %v887
        %v995 = vpop.f32.mrf.mxu0
        %v996 = vadd.f32 0.0, %v995
        %v997 = vpop.f32.mrf.mxu0
        %998 = vdwg.mxu0
        %v999 = vadd.f32 %v801, %v956
        %v1000 = vadd.f32 %v806, %v961
        %v1001 = vadd.f32 %v811, %v966
        %v1002 = vadd.f32 %v816, %v971
        %v1003 = vadd.f32 %v821, %v976
        %v1004 = vadd.f32 %v826, %v981
        %v1005 = vadd.f32 %v831, %v986
        %v1006 = vadd.f32 %v836, %v991
        %v1007 = vadd.f32 %v841, %v996
        %v1008 = vld [vmem:[%s407] sm:$0x1]
        %v1010 = vlaneseq
        %v1011 = vshrl.u32 %v1010, 7
        %v1012 = vsub.s32 0, %v1011
        %v1013 = vrot.slane %v1008, %v1012
        %v1015 = vmul.f32 %v999, %v1013
        %v1016 = vmul.f32 %v1000, %v1013
        %v1017 = vld [vmem:[%s416] sm:$0x1]
        %v1019 = vlaneseq
        %v1020 = vshrl.u32 %v1019, 7
        %v1021 = vsub.s32 0, %v1020
        %v1022 = vrot.slane %v1017, %v1021
        %v1024 = vadd.f32 %v1015, %v1022
        %v1025 = vadd.f32 %v1016, %v1022
        %v1026 = vmax.f32 %v1024, 0.0
        %v1027 = vmax.f32 %v1025, 0.0
        %1028 = vst [vmem:[#allocation3] sm:$0x1] 0.0
        %1029 = vst [vmem:[#allocation3 + $0x1] sm:$0xff] %v1026
        %1030 = vst [vmem:[#allocation3 + $0x9] sm:$0xff] %v1027
        %1031 = vst [vmem:[#allocation3 + $0x11] sm:$0x1] 0.0
        %s1032 = scalar_lea.vmem %s407, 1 [#allocation9]
        %v1033 = vld [vmem:[%s1032] sm:$0x1]
        %v1035 = vlaneseq
        %v1036 = vshrl.u32 %v1035, 7
        %v1037 = vsub.s32 0, %v1036
        %v1038 = vrot.slane %v1033, %v1037
        %v1040 = vmul.f32 %v1001, %v1038
        %v1041 = vmul.f32 %v1002, %v1038
        %v1042 = vmul.f32 %v1003, %v1038
        %s1043 = scalar_lea.vmem %s416, 1 [#allocation10]
        %v1044 = vld [vmem:[%s1043] sm:$0x1]
        %v1046 = vlaneseq
        %v1047 = vshrl.u32 %v1046, 7
        %v1048 = vsub.s32 0, %v1047
        %v1049 = vrot.slane %v1044, %v1048
        %v1051 = vadd.f32 %v1040, %v1049
        %v1052 = vadd.f32 %v1041, %v1049
        %v1053 = vadd.f32 %v1042, %v1049
        %v1054 = vmax.f32 %v1051, 0.0
        %v1055 = vmax.f32 %v1052, 0.0
        %v1056 = vmax.f32 %v1053, 0.0
        %1057 = vst [vmem:[#allocation3 + $0x12] sm:$0x1] 0.0
        %1058 = vst [vmem:[#allocation3 + $0x11] sm:$0xfc] %v1054
        %1059 = vst [vmem:[#allocation3 + $0x19] sm:$0xff] %v1055
        %1060 = vst [vmem:[#allocation3 + $0x21] sm:$0x3] %v1056
        %1061 = vst [vmem:[#allocation3 + $0x23] sm:$0x1] 0.0
        %s1062 = scalar_lea.vmem %s407, 2 [#allocation9]
        %v1063 = vld [vmem:[%s1062] sm:$0x1]
        %v1065 = vlaneseq
        %v1066 = vshrl.u32 %v1065, 7
        %v1067 = vsub.s32 0, %v1066
        %v1068 = vrot.slane %v1063, %v1067
        %v1070 = vmul.f32 %v1003, %v1068
        %v1071 = vmul.f32 %v1004, %v1068
        %v1072 = vmul.f32 %v1005, %v1068
        %s1073 = scalar_lea.vmem %s416, 2 [#allocation10]
        %v1074 = vld [vmem:[%s1073] sm:$0x1]
        %v1076 = vlaneseq
        %v1077 = vshrl.u32 %v1076, 7
        %v1078 = vsub.s32 0, %v1077
        %v1079 = vrot.slane %v1074, %v1078
        %v1081 = vadd.f32 %v1070, %v1079
        %v1082 = vadd.f32 %v1071, %v1079
        %v1083 = vadd.f32 %v1072, %v1079
        %v1084 = vmax.f32 %v1081, 0.0
        %v1085 = vmax.f32 %v1082, 0.0
        %v1086 = vmax.f32 %v1083, 0.0
        %1087 = vst [vmem:[#allocation3 + $0x24] sm:$0x1] 0.0
        %1088 = vst [vmem:[#allocation3 + $0x21] sm:$0xf0] %v1084
        %1089 = vst [vmem:[#allocation3 + $0x29] sm:$0xff] %v1085
        %1090 = vst [vmem:[#allocation3 + $0x31] sm:$0xf] %v1086
        %1091 = vst [vmem:[#allocation3 + $0x35] sm:$0x1] 0.0
        %s1092 = scalar_lea.vmem %s407, 3 [#allocation9]
        %v1093 = vld [vmem:[%s1092] sm:$0x1]
        %v1095 = vlaneseq
        %v1096 = vshrl.u32 %v1095, 7
        %v1097 = vsub.s32 0, %v1096
        %v1098 = vrot.slane %v1093, %v1097
        %v1100 = vmul.f32 %v1005, %v1098
        %v1101 = vmul.f32 %v1006, %v1098
        %v1102 = vmul.f32 %v1007, %v1098
        %s1103 = scalar_lea.vmem %s416, 3 [#allocation10]
        %v1104 = vld [vmem:[%s1103] sm:$0x1]
        %v1106 = vlaneseq
        %v1107 = vshrl.u32 %v1106, 7
        %v1108 = vsub.s32 0, %v1107
        %v1109 = vrot.slane %v1104, %v1108
        %v1111 = vadd.f32 %v1100, %v1109
        %v1112 = vadd.f32 %v1101, %v1109
        %v1113 = vadd.f32 %v1102, %v1109
        %v1114 = vmax.f32 %v1111, 0.0
        %v1115 = vmax.f32 %v1112, 0.0
        %v1116 = vmax.f32 %v1113, 0.0
        %1117 = vst [vmem:[#allocation3 + $0x36] sm:$0x1] 0.0
        %1118 = vst [vmem:[#allocation3 + $0x31] sm:$0xc0] %v1114
        %1119 = vst [vmem:[#allocation3 + $0x39] sm:$0xff] %v1115
        %1120 = vst [vmem:[#allocation3 + $0x41] sm:$0x3f] %v1116
        %1121 = vst [vmem:[#allocation3 + $0x47] sm:$0x1] 0.0
        %v1122 = vld [vmem:[#allocation3] sm:$0xff]
        %v1123 = vld [vmem:[#allocation3 + $0x8] sm:$0xff]
        %v1124 = vld [vmem:[#allocation3 + $0x10] sm:$0xff]
        %v1125 = vld [vmem:[#allocation3 + $0x18] sm:$0xff]
        %v1126 = vld [vmem:[#allocation3 + $0x20] sm:$0xff]
        %v1127 = vld [vmem:[#allocation3 + $0x28] sm:$0xff]
        %v1128 = vld [vmem:[#allocation3 + $0x30] sm:$0xff]
        %v1129 = vld [vmem:[#allocation3 + $0x38] sm:$0xff]
        %v1130 = vld [vmem:[#allocation3 + $0x40] sm:$0x3f]
        %v1131 = vld [vmem:[#allocation11] sm:$0xff]
        %v1132 = vld [vmem:[#allocation11 + $0x8] sm:$0xff]
        %v1133 = vld [vmem:[#allocation11 + $0x10] sm:$0xff]
        %v1134 = vld [vmem:[#allocation11 + $0x18] sm:$0xff]
        %v1135 = vld [vmem:[#allocation11 + $0x20] sm:$0xff]
        %v1136 = vld [vmem:[#allocation11 + $0x28] sm:$0xff]
        %v1137 = vld [vmem:[#allocation11 + $0x30] sm:$0xff]
        %v1138 = vld [vmem:[#allocation11 + $0x38] sm:$0xff]
        %v1139 = vld [vmem:[#allocation11 + $0x40] sm:$0xff]
        %v1140 = vld [vmem:[#allocation11 + $0x48] sm:$0xff]
        %v1141 = vld [vmem:[#allocation11 + $0x50] sm:$0xff]
        %v1142 = vld [vmem:[#allocation11 + $0x58] sm:$0xff]
        %v1143 = vld [vmem:[#allocation11 + $0x60] sm:$0xff]
        %v1144 = vld [vmem:[#allocation11 + $0x68] sm:$0xff]
        %v1145 = vld [vmem:[#allocation11 + $0x70] sm:$0xff]
        %v1146 = vld [vmem:[#allocation11 + $0x78] sm:$0xff]
        %v1147 = vld [vmem:[#allocation3 + $0x1] sm:$0xff]
        %v1148 = vld [vmem:[#allocation3 + $0x9] sm:$0xff]
        %v1149 = vld [vmem:[#allocation3 + $0x11] sm:$0xff]
        %v1150 = vld [vmem:[#allocation3 + $0x19] sm:$0xff]
        %v1151 = vld [vmem:[#allocation3 + $0x21] sm:$0xff]
        %v1152 = vld [vmem:[#allocation3 + $0x29] sm:$0xff]
        %v1153 = vld [vmem:[#allocation3 + $0x31] sm:$0xff]
        %v1154 = vld [vmem:[#allocation3 + $0x39] sm:$0xff]
        %v1155 = vld [vmem:[#allocation3 + $0x41] sm:$0x3f]
        %s1156 = scalar_lea.vmem [#allocation11], 128
        %v1157 = vld [vmem:[%s1156] sm:$0xff]
        %v1158 = vld [vmem:[%s1156 + $0x8] sm:$0xff]
        %v1159 = vld [vmem:[%s1156 + $0x10] sm:$0xff]
        %v1160 = vld [vmem:[%s1156 + $0x18] sm:$0xff]
        %v1161 = vld [vmem:[%s1156 + $0x20] sm:$0xff]
        %v1162 = vld [vmem:[%s1156 + $0x28] sm:$0xff]
        %v1163 = vld [vmem:[%s1156 + $0x30] sm:$0xff]
        %v1164 = vld [vmem:[%s1156 + $0x38] sm:$0xff]
        %v1165 = vld [vmem:[%s1156 + $0x40] sm:$0xff]
        %v1166 = vld [vmem:[%s1156 + $0x48] sm:$0xff]
        %v1167 = vld [vmem:[%s1156 + $0x50] sm:$0xff]
        %v1168 = vld [vmem:[%s1156 + $0x58] sm:$0xff]
        %v1169 = vld [vmem:[%s1156 + $0x60] sm:$0xff]
        %v1170 = vld [vmem:[%s1156 + $0x68] sm:$0xff]
        %v1171 = vld [vmem:[%s1156 + $0x70] sm:$0xff]
        %v1172 = vld [vmem:[%s1156 + $0x78] sm:$0xff]
        %1173 = vmatprep.subr.mxu0 0.0
        %1174 = vmatpush1.msra.mxu0 %v1172
        %1175 = vmatprep.subr.mxu0 0.0
        %1176 = vmatpush1.msra.mxu0 %v1171
        %1177 = vmatprep.subr.mxu0 0.0
        %1178 = vmatpush1.msra.mxu0 %v1170
        %1179 = vmatprep.subr.mxu0 0.0
        %1180 = vmatpush1.msra.mxu0 %v1169
        %1181 = vmatprep.subr.mxu0 0.0
        %1182 = vmatpush1.msra.mxu0 %v1168
        %1183 = vmatprep.subr.mxu0 0.0
        %1184 = vmatpush1.msra.mxu0 %v1167
        %1185 = vmatprep.subr.mxu0 0.0
        %1186 = vmatpush1.msra.mxu0 %v1166
        %1187 = vmatprep.subr.mxu0 0.0
        %1188 = vmatpush1.msra.mxu0 %v1165
        %1189 = vmatprep.subr.mxu0 0.0
        %1190 = vmatpush1.msra.mxu0 %v1164
        %1191 = vmatprep.subr.mxu0 0.0
        %1192 = vmatpush1.msra.mxu0 %v1163
        %1193 = vmatprep.subr.mxu0 0.0
        %1194 = vmatpush1.msra.mxu0 %v1162
        %1195 = vmatprep.subr.mxu0 0.0
        %1196 = vmatpush1.msra.mxu0 %v1161
        %1197 = vmatprep.subr.mxu0 0.0
        %1198 = vmatpush1.msra.mxu0 %v1160
        %1199 = vmatprep.subr.mxu0 0.0
        %1200 = vmatpush1.msra.mxu0 %v1159
        %1201 = vmatprep.subr.mxu0 0.0
        %1202 = vmatpush1.msra.mxu0 %v1158
        %1203 = vmatprep.subr.mxu0 0.0
        %1204 = vmatpush1.msra.mxu0 %v1157
        %1205 = vmatprep.subr.mxu0 0.0
        %1206 = vmatpush2.msra.mxu0 0.0
        %1207 = vmatprep.subr.mxu0 0.0
        %1208 = vmatpush2.msra.mxu0 0.0
        %1209 = vmatprep.subr.mxu0 0.0
        %1210 = vmatpush2.msra.mxu0 0.0
        %1211 = vmatprep.subr.mxu0 0.0
        %1212 = vmatpush2.msra.mxu0 0.0
        %1213 = vmatprep.subr.mxu0 0.0
        %1214 = vmatpush2.msra.mxu0 0.0
        %1215 = vmatprep.subr.mxu0 0.0
        %1216 = vmatpush2.msra.mxu0 0.0
        %1217 = vmatprep.subr.mxu0 0.0
        %1218 = vmatpush2.msra.mxu0 0.0
        %1219 = vmatprep.subr.mxu0 0.0
        %1220 = vmatpush2.msra.mxu0 0.0
        %1221 = vmatprep.subr.mxu0 0.0
        %1222 = vmatpush2.msra.mxu0 0.0
        %1223 = vmatprep.subr.mxu0 0.0
        %1224 = vmatpush2.msra.mxu0 0.0
        %1225 = vmatprep.subr.mxu0 0.0
        %1226 = vmatpush2.msra.mxu0 0.0
        %1227 = vmatprep.subr.mxu0 0.0
        %1228 = vmatpush2.msra.mxu0 0.0
        %1229 = vmatprep.subr.mxu0 0.0
        %1230 = vmatpush2.msra.mxu0 0.0
        %1231 = vmatprep.subr.mxu0 0.0
        %1232 = vmatpush2.msra.mxu0 0.0
        %1233 = vmatprep.subr.mxu0 0.0
        %1234 = vmatpush2.msra.mxu0 0.0
        %1235 = vmatprep.subr.mxu0 0.0
        %1236 = vmatpush2.msra.mxu0 0.0
        %1237 = vmatprep.mubr.f32.mxu0 0.0
        %1238 = vmatmul.mubr.f32.gmra.mxu0 %v1147
        %v1239 = vpop.f32.mrf.mxu0
        %v1240 = vadd.f32 0.0, %v1239
        %v1241 = vpop.f32.mrf.mxu0
        %1242 = vmatprep.mubr.f32.mxu0 0.0
        %1243 = vmatmul.mubr.f32.gmra.mxu0 %v1148
        %v1244 = vpop.f32.mrf.mxu0
        %v1245 = vadd.f32 0.0, %v1244
        %v1246 = vpop.f32.mrf.mxu0
        %1247 = vmatprep.mubr.f32.mxu0 0.0
        %1248 = vmatmul.mubr.f32.gmra.mxu0 %v1149
        %v1249 = vpop.f32.mrf.mxu0
        %v1250 = vadd.f32 0.0, %v1249
        %v1251 = vpop.f32.mrf.mxu0
        %1252 = vmatprep.mubr.f32.mxu0 0.0
        %1253 = vmatmul.mubr.f32.gmra.mxu0 %v1150
        %v1254 = vpop.f32.mrf.mxu0
        %v1255 = vadd.f32 0.0, %v1254
        %v1256 = vpop.f32.mrf.mxu0
        %1257 = vmatprep.mubr.f32.mxu0 0.0
        %1258 = vmatmul.mubr.f32.gmra.mxu0 %v1151
        %v1259 = vpop.f32.mrf.mxu0
        %v1260 = vadd.f32 0.0, %v1259
        %v1261 = vpop.f32.mrf.mxu0
        %1262 = vmatprep.mubr.f32.mxu0 0.0
        %1263 = vmatmul.mubr.f32.gmra.mxu0 %v1152
        %v1264 = vpop.f32.mrf.mxu0
        %v1265 = vadd.f32 0.0, %v1264
        %v1266 = vpop.f32.mrf.mxu0
        %1267 = vmatprep.mubr.f32.mxu0 0.0
        %1268 = vmatmul.mubr.f32.gmra.mxu0 %v1153
        %v1269 = vpop.f32.mrf.mxu0
        %v1270 = vadd.f32 0.0, %v1269
        %v1271 = vpop.f32.mrf.mxu0
        %1272 = vmatprep.mubr.f32.mxu0 0.0
        %1273 = vmatmul.mubr.f32.gmra.mxu0 %v1154
        %v1274 = vpop.f32.mrf.mxu0
        %v1275 = vadd.f32 0.0, %v1274
        %v1276 = vpop.f32.mrf.mxu0
        %1277 = vmatprep.mubr.f32.mxu0 0.0
        %1278 = vmatmul.mubr.f32.gmra.mxu0 %v1155
        %v1279 = vpop.f32.mrf.mxu0
        %v1280 = vadd.f32 0.0, %v1279
        %v1281 = vpop.f32.mrf.mxu0
        %1282 = vdwg.mxu0
        %1283 = vmatprep.subr.mxu0 0.0
        %1284 = vmatpush1.msra.mxu0 %v1146
        %1285 = vmatprep.subr.mxu0 0.0
        %1286 = vmatpush1.msra.mxu0 %v1145
        %1287 = vmatprep.subr.mxu0 0.0
        %1288 = vmatpush1.msra.mxu0 %v1144
        %1289 = vmatprep.subr.mxu0 0.0
        %1290 = vmatpush1.msra.mxu0 %v1143
        %1291 = vmatprep.subr.mxu0 0.0
        %1292 = vmatpush1.msra.mxu0 %v1142
        %1293 = vmatprep.subr.mxu0 0.0
        %1294 = vmatpush1.msra.mxu0 %v1141
        %1295 = vmatprep.subr.mxu0 0.0
        %1296 = vmatpush1.msra.mxu0 %v1140
        %1297 = vmatprep.subr.mxu0 0.0
        %1298 = vmatpush1.msra.mxu0 %v1139
        %1299 = vmatprep.subr.mxu0 0.0
        %1300 = vmatpush1.msra.mxu0 %v1138
        %1301 = vmatprep.subr.mxu0 0.0
        %1302 = vmatpush1.msra.mxu0 %v1137
        %1303 = vmatprep.subr.mxu0 0.0
        %1304 = vmatpush1.msra.mxu0 %v1136
        %1305 = vmatprep.subr.mxu0 0.0
        %1306 = vmatpush1.msra.mxu0 %v1135
        %1307 = vmatprep.subr.mxu0 0.0
        %1308 = vmatpush1.msra.mxu0 %v1134
        %1309 = vmatprep.subr.mxu0 0.0
        %1310 = vmatpush1.msra.mxu0 %v1133
        %1311 = vmatprep.subr.mxu0 0.0
        %1312 = vmatpush1.msra.mxu0 %v1132
        %1313 = vmatprep.subr.mxu0 0.0
        %1314 = vmatpush1.msra.mxu0 %v1131
        %1315 = vmatprep.subr.mxu0 0.0
        %1316 = vmatpush2.msra.mxu0 0.0
        %1317 = vmatprep.subr.mxu0 0.0
        %1318 = vmatpush2.msra.mxu0 0.0
        %1319 = vmatprep.subr.mxu0 0.0
        %1320 = vmatpush2.msra.mxu0 0.0
        %1321 = vmatprep.subr.mxu0 0.0
        %1322 = vmatpush2.msra.mxu0 0.0
        %1323 = vmatprep.subr.mxu0 0.0
        %1324 = vmatpush2.msra.mxu0 0.0
        %1325 = vmatprep.subr.mxu0 0.0
        %1326 = vmatpush2.msra.mxu0 0.0
        %1327 = vmatprep.subr.mxu0 0.0
        %1328 = vmatpush2.msra.mxu0 0.0
        %1329 = vmatprep.subr.mxu0 0.0
        %1330 = vmatpush2.msra.mxu0 0.0
        %1331 = vmatprep.subr.mxu0 0.0
        %1332 = vmatpush2.msra.mxu0 0.0
        %1333 = vmatprep.subr.mxu0 0.0
        %1334 = vmatpush2.msra.mxu0 0.0
        %1335 = vmatprep.subr.mxu0 0.0
        %1336 = vmatpush2.msra.mxu0 0.0
        %1337 = vmatprep.subr.mxu0 0.0
        %1338 = vmatpush2.msra.mxu0 0.0
        %1339 = vmatprep.subr.mxu0 0.0
        %1340 = vmatpush2.msra.mxu0 0.0
        %1341 = vmatprep.subr.mxu0 0.0
        %1342 = vmatpush2.msra.mxu0 0.0
        %1343 = vmatprep.subr.mxu0 0.0
        %1344 = vmatpush2.msra.mxu0 0.0
        %1345 = vmatprep.subr.mxu0 0.0
        %1346 = vmatpush2.msra.mxu0 0.0
        %1347 = vmatprep.mubr.f32.mxu0 0.0
        %1348 = vmatmul.mubr.f32.gmra.mxu0 %v1122
        %v1349 = vpop.f32.mrf.mxu0
        %v1350 = vadd.f32 %v1240, %v1349
        %v1351 = vpop.f32.mrf.mxu0
        %1352 = vmatprep.mubr.f32.mxu0 0.0
        %1353 = vmatmul.mubr.f32.gmra.mxu0 %v1123
        %v1354 = vpop.f32.mrf.mxu0
        %v1355 = vadd.f32 %v1245, %v1354
        %v1356 = vpop.f32.mrf.mxu0
        %1357 = vmatprep.mubr.f32.mxu0 0.0
        %1358 = vmatmul.mubr.f32.gmra.mxu0 %v1124
        %v1359 = vpop.f32.mrf.mxu0
        %v1360 = vadd.f32 %v1250, %v1359
        %v1361 = vpop.f32.mrf.mxu0
        %1362 = vmatprep.mubr.f32.mxu0 0.0
        %1363 = vmatmul.mubr.f32.gmra.mxu0 %v1125
        %v1364 = vpop.f32.mrf.mxu0
        %v1365 = vadd.f32 %v1255, %v1364
        %v1366 = vpop.f32.mrf.mxu0
        %1367 = vmatprep.mubr.f32.mxu0 0.0
        %1368 = vmatmul.mubr.f32.gmra.mxu0 %v1126
        %v1369 = vpop.f32.mrf.mxu0
        %v1370 = vadd.f32 %v1260, %v1369
        %v1371 = vpop.f32.mrf.mxu0
        %1372 = vmatprep.mubr.f32.mxu0 0.0
        %1373 = vmatmul.mubr.f32.gmra.mxu0 %v1127
        %v1374 = vpop.f32.mrf.mxu0
        %v1375 = vadd.f32 %v1265, %v1374
        %v1376 = vpop.f32.mrf.mxu0
        %1377 = vmatprep.mubr.f32.mxu0 0.0
        %1378 = vmatmul.mubr.f32.gmra.mxu0 %v1128
        %v1379 = vpop.f32.mrf.mxu0
        %v1380 = vadd.f32 %v1270, %v1379
        %v1381 = vpop.f32.mrf.mxu0
        %1382 = vmatprep.mubr.f32.mxu0 0.0
        %1383 = vmatmul.mubr.f32.gmra.mxu0 %v1129
        %v1384 = vpop.f32.mrf.mxu0
        %v1385 = vadd.f32 %v1275, %v1384
        %v1386 = vpop.f32.mrf.mxu0
        %1387 = vmatprep.mubr.f32.mxu0 0.0
        %1388 = vmatmul.mubr.f32.gmra.mxu0 %v1130
        %v1389 = vpop.f32.mrf.mxu0
        %v1390 = vadd.f32 %v1280, %v1389
        %v1391 = vpop.f32.mrf.mxu0
        %1392 = vdwg.mxu0
        %v1393 = vld [vmem:[#allocation3 + $0x2] sm:$0xff]
        %v1394 = vld [vmem:[#allocation3 + $0xa] sm:$0xff]
        %v1395 = vld [vmem:[#allocation3 + $0x12] sm:$0xff]
        %v1396 = vld [vmem:[#allocation3 + $0x1a] sm:$0xff]
        %v1397 = vld [vmem:[#allocation3 + $0x22] sm:$0xff]
        %v1398 = vld [vmem:[#allocation3 + $0x2a] sm:$0xff]
        %v1399 = vld [vmem:[#allocation3 + $0x32] sm:$0xff]
        %v1400 = vld [vmem:[#allocation3 + $0x3a] sm:$0xff]
        %v1401 = vld [vmem:[#allocation3 + $0x42] sm:$0x3f]
        %s1402 = scalar_lea.vmem [#allocation11], 256
        %v1403 = vld [vmem:[%s1402] sm:$0xff]
        %v1404 = vld [vmem:[%s1402 + $0x8] sm:$0xff]
        %v1405 = vld [vmem:[%s1402 + $0x10] sm:$0xff]
        %v1406 = vld [vmem:[%s1402 + $0x18] sm:$0xff]
        %v1407 = vld [vmem:[%s1402 + $0x20] sm:$0xff]
        %v1408 = vld [vmem:[%s1402 + $0x28] sm:$0xff]
        %v1409 = vld [vmem:[%s1402 + $0x30] sm:$0xff]
        %v1410 = vld [vmem:[%s1402 + $0x38] sm:$0xff]
        %v1411 = vld [vmem:[%s1402 + $0x40] sm:$0xff]
        %v1412 = vld [vmem:[%s1402 + $0x48] sm:$0xff]
        %v1413 = vld [vmem:[%s1402 + $0x50] sm:$0xff]
        %v1414 = vld [vmem:[%s1402 + $0x58] sm:$0xff]
        %v1415 = vld [vmem:[%s1402 + $0x60] sm:$0xff]
        %v1416 = vld [vmem:[%s1402 + $0x68] sm:$0xff]
        %v1417 = vld [vmem:[%s1402 + $0x70] sm:$0xff]
        %v1418 = vld [vmem:[%s1402 + $0x78] sm:$0xff]
        %1419 = vmatprep.subr.mxu0 0.0
        %1420 = vmatpush1.msra.mxu0 %v1418
        %1421 = vmatprep.subr.mxu0 0.0
        %1422 = vmatpush1.msra.mxu0 %v1417
        %1423 = vmatprep.subr.mxu0 0.0
        %1424 = vmatpush1.msra.mxu0 %v1416
        %1425 = vmatprep.subr.mxu0 0.0
        %1426 = vmatpush1.msra.mxu0 %v1415
        %1427 = vmatprep.subr.mxu0 0.0
        %1428 = vmatpush1.msra.mxu0 %v1414
        %1429 = vmatprep.subr.mxu0 0.0
        %1430 = vmatpush1.msra.mxu0 %v1413
        %1431 = vmatprep.subr.mxu0 0.0
        %1432 = vmatpush1.msra.mxu0 %v1412
        %1433 = vmatprep.subr.mxu0 0.0
        %1434 = vmatpush1.msra.mxu0 %v1411
        %1435 = vmatprep.subr.mxu0 0.0
        %1436 = vmatpush1.msra.mxu0 %v1410
        %1437 = vmatprep.subr.mxu0 0.0
        %1438 = vmatpush1.msra.mxu0 %v1409
        %1439 = vmatprep.subr.mxu0 0.0
        %1440 = vmatpush1.msra.mxu0 %v1408
        %1441 = vmatprep.subr.mxu0 0.0
        %1442 = vmatpush1.msra.mxu0 %v1407
        %1443 = vmatprep.subr.mxu0 0.0
        %1444 = vmatpush1.msra.mxu0 %v1406
        %1445 = vmatprep.subr.mxu0 0.0
        %1446 = vmatpush1.msra.mxu0 %v1405
        %1447 = vmatprep.subr.mxu0 0.0
        %1448 = vmatpush1.msra.mxu0 %v1404
        %1449 = vmatprep.subr.mxu0 0.0
        %1450 = vmatpush1.msra.mxu0 %v1403
        %1451 = vmatprep.subr.mxu0 0.0
        %1452 = vmatpush2.msra.mxu0 0.0
        %1453 = vmatprep.subr.mxu0 0.0
        %1454 = vmatpush2.msra.mxu0 0.0
        %1455 = vmatprep.subr.mxu0 0.0
        %1456 = vmatpush2.msra.mxu0 0.0
        %1457 = vmatprep.subr.mxu0 0.0
        %1458 = vmatpush2.msra.mxu0 0.0
        %1459 = vmatprep.subr.mxu0 0.0
        %1460 = vmatpush2.msra.mxu0 0.0
        %1461 = vmatprep.subr.mxu0 0.0
        %1462 = vmatpush2.msra.mxu0 0.0
        %1463 = vmatprep.subr.mxu0 0.0
        %1464 = vmatpush2.msra.mxu0 0.0
        %1465 = vmatprep.subr.mxu0 0.0
        %1466 = vmatpush2.msra.mxu0 0.0
        %1467 = vmatprep.subr.mxu0 0.0
        %1468 = vmatpush2.msra.mxu0 0.0
        %1469 = vmatprep.subr.mxu0 0.0
        %1470 = vmatpush2.msra.mxu0 0.0
        %1471 = vmatprep.subr.mxu0 0.0
        %1472 = vmatpush2.msra.mxu0 0.0
        %1473 = vmatprep.subr.mxu0 0.0
        %1474 = vmatpush2.msra.mxu0 0.0
        %1475 = vmatprep.subr.mxu0 0.0
        %1476 = vmatpush2.msra.mxu0 0.0
        %1477 = vmatprep.subr.mxu0 0.0
        %1478 = vmatpush2.msra.mxu0 0.0
        %1479 = vmatprep.subr.mxu0 0.0
        %1480 = vmatpush2.msra.mxu0 0.0
        %1481 = vmatprep.subr.mxu0 0.0
        %1482 = vmatpush2.msra.mxu0 0.0
        %1483 = vmatprep.mubr.f32.mxu0 0.0
        %1484 = vmatmul.mubr.f32.gmra.mxu0 %v1393
        %v1485 = vpop.f32.mrf.mxu0
        %v1486 = vadd.f32 0.0, %v1485
        %v1487 = vpop.f32.mrf.mxu0
        %1488 = vmatprep.mubr.f32.mxu0 0.0
        %1489 = vmatmul.mubr.f32.gmra.mxu0 %v1394
        %v1490 = vpop.f32.mrf.mxu0
        %v1491 = vadd.f32 0.0, %v1490
        %v1492 = vpop.f32.mrf.mxu0
        %1493 = vmatprep.mubr.f32.mxu0 0.0
        %1494 = vmatmul.mubr.f32.gmra.mxu0 %v1395
        %v1495 = vpop.f32.mrf.mxu0
        %v1496 = vadd.f32 0.0, %v1495
        %v1497 = vpop.f32.mrf.mxu0
        %1498 = vmatprep.mubr.f32.mxu0 0.0
        %1499 = vmatmul.mubr.f32.gmra.mxu0 %v1396
        %v1500 = vpop.f32.mrf.mxu0
        %v1501 = vadd.f32 0.0, %v1500
        %v1502 = vpop.f32.mrf.mxu0
        %1503 = vmatprep.mubr.f32.mxu0 0.0
        %1504 = vmatmul.mubr.f32.gmra.mxu0 %v1397
        %v1505 = vpop.f32.mrf.mxu0
        %v1506 = vadd.f32 0.0, %v1505
        %v1507 = vpop.f32.mrf.mxu0
        %1508 = vmatprep.mubr.f32.mxu0 0.0
        %1509 = vmatmul.mubr.f32.gmra.mxu0 %v1398
        %v1510 = vpop.f32.mrf.mxu0
        %v1511 = vadd.f32 0.0, %v1510
        %v1512 = vpop.f32.mrf.mxu0
        %1513 = vmatprep.mubr.f32.mxu0 0.0
        %1514 = vmatmul.mubr.f32.gmra.mxu0 %v1399
        %v1515 = vpop.f32.mrf.mxu0
        %v1516 = vadd.f32 0.0, %v1515
        %v1517 = vpop.f32.mrf.mxu0
        %1518 = vmatprep.mubr.f32.mxu0 0.0
        %1519 = vmatmul.mubr.f32.gmra.mxu0 %v1400
        %v1520 = vpop.f32.mrf.mxu0
        %v1521 = vadd.f32 0.0, %v1520
        %v1522 = vpop.f32.mrf.mxu0
        %1523 = vmatprep.mubr.f32.mxu0 0.0
        %1524 = vmatmul.mubr.f32.gmra.mxu0 %v1401
        %v1525 = vpop.f32.mrf.mxu0
        %v1526 = vadd.f32 0.0, %v1525
        %v1527 = vpop.f32.mrf.mxu0
        %1528 = vdwg.mxu0
        %v1529 = vadd.f32 %v1350, %v1486
        %v1530 = vadd.f32 %v1355, %v1491
        %v1531 = vadd.f32 %v1360, %v1496
        %v1532 = vadd.f32 %v1365, %v1501
        %v1533 = vadd.f32 %v1370, %v1506
        %v1534 = vadd.f32 %v1375, %v1511
        %v1535 = vadd.f32 %v1380, %v1516
        %v1536 = vadd.f32 %v1385, %v1521
        %v1537 = vadd.f32 %v1390, %v1526
        %v1538 = vld [vmem:[#allocation12] sm:$0xff]
        %v1539 = vld [vmem:[#allocation12 + $0x8] sm:$0xff]
        %v1540 = vld [vmem:[#allocation12 + $0x10] sm:$0xff]
        %v1541 = vld [vmem:[#allocation12 + $0x18] sm:$0xff]
        %v1542 = vld [vmem:[#allocation12 + $0x20] sm:$0xff]
        %v1543 = vld [vmem:[#allocation12 + $0x28] sm:$0xff]
        %v1544 = vld [vmem:[#allocation12 + $0x30] sm:$0xff]
        %v1545 = vld [vmem:[#allocation12 + $0x38] sm:$0xff]
        %v1547 = vsel %vm519, %v471, 0
        %v1550 = vsel %vm519, %v472, 0
        %v1553 = vsel %vm519, %v473, 0
        %v1556 = vsel %vm519, %v474, 0
        %v1559 = vsel %vm519, %v475, 0
        %v1562 = vsel %vm519, %v476, 0
        %v1565 = vsel %vm519, %v477, 0
        %v1568 = vsel %vm519, %v478, 0
        %1570 = vmatprep.subr.mxu0 0.0
        %1571 = vmatpush1.msra.mxu0 0.0
        %1572 = vmatprep.subr.mxu0 0.0
        %1573 = vmatpush1.msra.mxu0 0.0
        %1574 = vmatprep.subr.mxu0 0.0
        %1575 = vmatpush1.msra.mxu0 0.0
        %1576 = vmatprep.subr.mxu0 0.0
        %1577 = vmatpush1.msra.mxu0 0.0
        %1578 = vmatprep.subr.mxu0 0.0
        %1579 = vmatpush1.msra.mxu0 0.0
        %1580 = vmatprep.subr.mxu0 0.0
        %1581 = vmatpush1.msra.mxu0 0.0
        %1582 = vmatprep.subr.mxu0 0.0
        %1583 = vmatpush1.msra.mxu0 0.0
        %1584 = vmatprep.subr.mxu0 0.0
        %1585 = vmatpush1.msra.mxu0 0.0
        %1586 = vmatprep.subr.mxu0 0.0
        %1587 = vmatpush1.msra.mxu0 %v1545
        %1588 = vmatprep.subr.mxu0 0.0
        %1589 = vmatpush1.msra.mxu0 %v1544
        %1590 = vmatprep.subr.mxu0 0.0
        %1591 = vmatpush1.msra.mxu0 %v1543
        %1592 = vmatprep.subr.mxu0 0.0
        %1593 = vmatpush1.msra.mxu0 %v1542
        %1594 = vmatprep.subr.mxu0 0.0
        %1595 = vmatpush1.msra.mxu0 %v1541
        %1596 = vmatprep.subr.mxu0 0.0
        %1597 = vmatpush1.msra.mxu0 %v1540
        %1598 = vmatprep.subr.mxu0 0.0
        %1599 = vmatpush1.msra.mxu0 %v1539
        %1600 = vmatprep.subr.mxu0 0.0
        %1601 = vmatpush1.msra.mxu0 %v1538
        %1602 = vmatprep.subr.mxu0 0.0
        %1603 = vmatpush2.msra.mxu0 0.0
        %1604 = vmatprep.subr.mxu0 0.0
        %1605 = vmatpush2.msra.mxu0 0.0
        %1606 = vmatprep.subr.mxu0 0.0
        %1607 = vmatpush2.msra.mxu0 0.0
        %1608 = vmatprep.subr.mxu0 0.0
        %1609 = vmatpush2.msra.mxu0 0.0
        %1610 = vmatprep.subr.mxu0 0.0
        %1611 = vmatpush2.msra.mxu0 0.0
        %1612 = vmatprep.subr.mxu0 0.0
        %1613 = vmatpush2.msra.mxu0 0.0
        %1614 = vmatprep.subr.mxu0 0.0
        %1615 = vmatpush2.msra.mxu0 0.0
        %1616 = vmatprep.subr.mxu0 0.0
        %1617 = vmatpush2.msra.mxu0 0.0
        %1618 = vmatprep.subr.mxu0 0.0
        %1619 = vmatpush2.msra.mxu0 0.0
        %1620 = vmatprep.subr.mxu0 0.0
        %1621 = vmatpush2.msra.mxu0 0.0
        %1622 = vmatprep.subr.mxu0 0.0
        %1623 = vmatpush2.msra.mxu0 0.0
        %1624 = vmatprep.subr.mxu0 0.0
        %1625 = vmatpush2.msra.mxu0 0.0
        %1626 = vmatprep.subr.mxu0 0.0
        %1627 = vmatpush2.msra.mxu0 0.0
        %1628 = vmatprep.subr.mxu0 0.0
        %1629 = vmatpush2.msra.mxu0 0.0
        %1630 = vmatprep.subr.mxu0 0.0
        %1631 = vmatpush2.msra.mxu0 0.0
        %1632 = vmatprep.subr.mxu0 0.0
        %1633 = vmatpush2.msra.mxu0 0.0
        %1634 = vmatprep.mubr.f32.mxu0 0.0
        %1635 = vmatmul.mubr.f32.gmra.mxu0 %v1547
        %v1636 = vpop.f32.mrf.mxu0
        %v1637 = vadd.f32 0.0, %v1636
        %v1638 = vpop.f32.mrf.mxu0
        %1639 = vmatprep.mubr.f32.mxu0 0.0
        %1640 = vmatmul.mubr.f32.gmra.mxu0 %v1550
        %v1641 = vpop.f32.mrf.mxu0
        %v1642 = vadd.f32 0.0, %v1641
        %v1643 = vpop.f32.mrf.mxu0
        %1644 = vmatprep.mubr.f32.mxu0 0.0
        %1645 = vmatmul.mubr.f32.gmra.mxu0 %v1553
        %v1646 = vpop.f32.mrf.mxu0
        %v1647 = vadd.f32 0.0, %v1646
        %v1648 = vpop.f32.mrf.mxu0
        %1649 = vmatprep.mubr.f32.mxu0 0.0
        %1650 = vmatmul.mubr.f32.gmra.mxu0 %v1556
        %v1651 = vpop.f32.mrf.mxu0
        %v1652 = vadd.f32 0.0, %v1651
        %v1653 = vpop.f32.mrf.mxu0
        %1654 = vmatprep.mubr.f32.mxu0 0.0
        %1655 = vmatmul.mubr.f32.gmra.mxu0 %v1559
        %v1656 = vpop.f32.mrf.mxu0
        %v1657 = vadd.f32 0.0, %v1656
        %v1658 = vpop.f32.mrf.mxu0
        %1659 = vmatprep.mubr.f32.mxu0 0.0
        %1660 = vmatmul.mubr.f32.gmra.mxu0 %v1562
        %v1661 = vpop.f32.mrf.mxu0
        %v1662 = vadd.f32 0.0, %v1661
        %v1663 = vpop.f32.mrf.mxu0
        %1664 = vmatprep.mubr.f32.mxu0 0.0
        %1665 = vmatmul.mubr.f32.gmra.mxu0 %v1565
        %v1666 = vpop.f32.mrf.mxu0
        %v1667 = vadd.f32 0.0, %v1666
        %v1668 = vpop.f32.mrf.mxu0
        %1669 = vmatprep.mubr.f32.mxu0 0.0
        %1670 = vmatmul.mubr.f32.gmra.mxu0 %v1568
        %v1671 = vpop.f32.mrf.mxu0
        %v1672 = vadd.f32 0.0, %v1671
        %v1673 = vpop.f32.mrf.mxu0
        %1674 = vdwg.mxu0
        %v1675 = vld [vmem:[%s7] sm:$0x1]
        %v1677 = vlaneseq
        %v1678 = vshrl.u32 %v1677, 7
        %v1679 = vsub.s32 0, %v1678
        %v1680 = vrot.slane %v1675, %v1679
        %v1682 = vadd.f32 %v1529, %v1680
        %v1683 = vadd.f32 %v1530, %v1680
        %v1684 = vadd.f32 %v1682, %v1637
        %v1685 = vadd.f32 %v1683, %v1642
        %1686 = vst [vmem:[%s468] sm:$0xff] %v1684
        %1687 = vst [vmem:[%s468 + $0x8] sm:$0xff] %v1685
        %v1688 = vld [vmem:[%s7] sm:$0x1]
        %v1690 = vlaneseq
        %v1691 = vshrl.u32 %v1690, 7
        %v1692 = vsub.s32 0, %v1691
        %v1693 = vrot.slane %v1688, %v1692
        %v1695 = vadd.f32 %v1531, %v1693
        %v1696 = vadd.f32 %v1532, %v1693
        %v1697 = vadd.f32 %v1533, %v1693
        %vm1700 = vcmask 1041408
        %v1701 = vrot.slane %v1647, 6
        %v1702 = vrot.slane %v1652, 6
        %v1703 = vsel %vm1700, %v1701, %v1702
        %v1707 = vadd.f32 %v1695, %v1701
        %v1708 = vadd.f32 %v1696, %v1703
        %v1709 = vadd.f32 %v1697, %v1702
        %1710 = vst [vmem:[%s468 + $0xe] sm:$0xfc] %v1707
        %1711 = vst [vmem:[%s468 + $0x16] sm:$0xff] %v1708
        %1712 = vst [vmem:[%s468 + $0x1e] sm:$0x3] %v1709
        %v1713 = vld [vmem:[%s7] sm:$0x1]
        %v1715 = vlaneseq
        %v1716 = vshrl.u32 %v1715, 7
        %v1717 = vsub.s32 0, %v1716
        %v1718 = vrot.slane %v1713, %v1717
        %v1720 = vadd.f32 %v1533, %v1718
        %v1721 = vadd.f32 %v1534, %v1718
        %v1722 = vadd.f32 %v1535, %v1718
        %vm1725 = vcmask 1043456
        %v1726 = vrot.slane %v1657, 4
        %v1727 = vrot.slane %v1662, 4
        %v1728 = vsel %vm1725, %v1726, %v1727
        %v1732 = vadd.f32 %v1720, %v1726
        %v1733 = vadd.f32 %v1721, %v1728
        %v1734 = vadd.f32 %v1722, %v1727
        %1735 = vst [vmem:[%s468 + $0x1c] sm:$0xf0] %v1732
        %1736 = vst [vmem:[%s468 + $0x24] sm:$0xff] %v1733
        %1737 = vst [vmem:[%s468 + $0x2c] sm:$0xf] %v1734
        %v1738 = vld [vmem:[%s7] sm:$0x1]
        %v1740 = vlaneseq
        %v1741 = vshrl.u32 %v1740, 7
        %v1742 = vsub.s32 0, %v1741
        %v1743 = vrot.slane %v1738, %v1742
        %v1745 = vadd.f32 %v1535, %v1743
        %v1746 = vadd.f32 %v1536, %v1743
        %v1747 = vadd.f32 %v1537, %v1743
        %vm1750 = vcmask 1045504
        %v1751 = vrot.slane %v1667, 2
        %v1752 = vrot.slane %v1672, 2
        %v1753 = vsel %vm1750, %v1751, %v1752
        %v1757 = vadd.f32 %v1745, %v1751
        %v1758 = vadd.f32 %v1746, %v1753
        %v1759 = vadd.f32 %v1747, %v1752
        %1760 = vst [vmem:[%s468 + $0x2a] sm:$0xc0] %v1757
        %1761 = vst [vmem:[%s468 + $0x32] sm:$0xff] %v1758
        %1762 = vst [vmem:[%s468 + $0x3a] sm:$0x3f] %v1759
        %s1763 = sand.u32 %s240, 1
        %s1764 = scalar_lea.sflag [#allocation6], %s1763
        %s1765 = sand.u32 %s240, 1
        %s1766 = smul.addr %s1765, 64
        %s1767 = scalar_lea.vmem [#allocation14], %s1766
        // Predicated region
        $region81: #{tpu_custom_call.1} parent=55 // pred_check
          %p1768 = pneg %p250
        $region82: #{tpu_custom_call.1} parent=55 // pred_check_branch
          %1770 = sbr.rel (%p1768) target = $region84
        $region83: #{tpu_custom_call.1} parent=55 // pred_region
          %s1772 = ssub.s32 1024, 1024
          %1773 = vsyncadd %s1764, %s1772
          %s1774 = smul.addr %s28, 8
          %s1775 = smul.addr %s1774, 128
          %s1776 = scalar_lea.hbm %s9, %s1775
          %s1777 = sshll.u32 %s1767, 4
          %s1778 = int_to_ptr.vmem [resolvable:$true] %s1777
          %1783 = dma.vmem_to_hbm [thread:$0]  %s1778, 1024, %s1776, %s1764, 128, 128, 8
        $region84: #{tpu_custom_call.1} parent=55 // pred_fallthru
          _
      $region56: #{tpu_custom_call.1} parent=5 // pred_fallthru
        _
      %p1784 = scmp.le.s32.totalorder 2, %s23
      // Predicated region
      $region85: #{tpu_custom_call.1} parent=5 // pred_check
        %p1785 = pneg %p1784
      $region86: #{tpu_custom_call.1} parent=5 // pred_check_branch
        %1787 = sbr.rel (%p1785) target = $region88
      $region87: #{tpu_custom_call.1} parent=5 // pred_region
        %s1788 = ssub.s32 %s23, 2
        // Predicated region
        $region89: #{tpu_custom_call.1} parent=87 // pred_check
          %p1789 = pneg %p256
        $region90: #{tpu_custom_call.1} parent=87 // pred_check_branch
          %1791 = sbr.rel (%p1789) target = $region92
        $region91: #{tpu_custom_call.1} parent=87 // pred_region
          %s1792 = sand.u32 %s241, 1
          %s1793 = scalar_lea.sflag [#allocation6], %s1792
          %s1794 = sand.u32 %s241, 1
          %s1795 = smul.addr %s1794, 64
          %s1796 = scalar_lea.vmem [#allocation14], %s1795
          %1797 = dma.done %s1793, 1024
        $region92: #{tpu_custom_call.1} parent=87 // pred_fallthru
          _
      $region88: #{tpu_custom_call.1} parent=5 // pred_fallthru
        _
    $region6: #{tpu_custom_call.1} parent=1 // loop_footer
      %s27 = sadd.s32 1, %s23
    $region7: #{tpu_custom_call.1} parent=1 // loop_footer_branch
      %22 = sbr.rel target = $region3
    $region8: #{tpu_custom_call.1} parent=1 // loop_exit
      _
    %1798 = vsyncpa [#allocation5], 1
    %s1799 = scalar_lea.sflag [#allocation5], 1
    %1800 = vsyncpa %s1799, 1
    %1801 = vsyncpa [#allocation8], 1
    %1802 = vsyncpa [#allocation13], 1
    %1803 = vsyncpa [#allocation6], 1
    %s1804 = scalar_lea.sflag [#allocation6], 1
    %1805 = vsyncpa %s1804, 1

</llo_original>
